<compile_context>
chip_gen: v7x
topology: tpu7x:2x2x1
jax: 0.10.0
libtpu: 0.0.40
codegen_flags: <defaults>
</compile_context>

<pallas_src>
import functools

import jax
import jax.numpy as jnp
from jax.experimental import pallas as pl
from jax.experimental.pallas import tpu as pltpu

LANE = 128
MiB = 1024 * 1024


def _round_up(x, m):
    return (x + m - 1) // m * m


def _pick_tile(n_pad, target):
    """Largest multiple of LANE that divides n_pad and is <= target."""
    target = max(LANE, min(target, n_pad))
    best = LANE
    t = LANE
    while t <= target:
        if n_pad % t == 0:
            best = t
        t += LANE
    return best


def _pick_row_tile(n_pad, target):
    """Row tile; keep >= 2 row tiles so the parallel axis splits across 2 TCs (v7x)."""
    if n_pad >= 2 * LANE:
        target = min(target, n_pad // 2)
    return _pick_tile(n_pad, target)


def _vmem_limit(footprint_bytes):
    """Generation-aware scoped-VMEM request with headroom for compiler scratch."""
    try:
        phys = int(pltpu.get_tpu_info().vmem_capacity_bytes)
    except Exception:  # pragma: no cover - conservative fallback
        phys = 64 * MiB
    cap = max(16 * MiB, phys - 16 * MiB)      # ~48 MiB on v7x, ~112 MiB on v5e/v6e
    want = max(2 * footprint_bytes, 32 * MiB)
    return int(min(want, cap))


def _input_spec(shape, index_map, depth):
    """BlockSpec with optional deeper pipelining (guarded for older jax)."""
    if depth > 2:
        try:
            return pl.BlockSpec(shape, index_map, pipeline_mode=pl.Buffered(depth))
        except TypeError:
            pass
    return pl.BlockSpec(shape, index_map)


# ----------------------------------------------------------------------------
# Pallas kernel 1: feature projection  XWl = X @ W_l   (tiny GEMM, row-tiled)
# ----------------------------------------------------------------------------
def _project_kernel(x_ref, w_ref, o_ref):
    o_ref[...] = jnp.dot(
        x_ref[...], w_ref[...], preferred_element_type=jnp.float32
    ).astype(o_ref.dtype)


def project(x_bf16, w_l, *, tile_m=1024):
    n_pad, f_in = x_bf16.shape
    f_out = w_l.shape[1]
    tm = _pick_tile(n_pad, tile_m)
    return pl.pallas_call(
        _project_kernel,
        out_shape=jax.ShapeDtypeStruct((n_pad, f_out), jnp.bfloat16),
        grid_spec=pltpu.PrefetchScalarGridSpec(
            num_scalar_prefetch=0,
            grid=(n_pad // tm,),
            in_specs=[
                pl.BlockSpec((tm, f_in), lambda i: (i, 0)),
                pl.BlockSpec((f_in, f_out), lambda i: (0, 0)),
            ],
            out_specs=pl.BlockSpec((tm, f_out), lambda i: (i, 0)),
        ),
        compiler_params=pltpu.CompilerParams(dimension_semantics=("parallel",)),
    )(x_bf16, w_l)


# ----------------------------------------------------------------------------
# Pallas kernel 2: aggregation + root/self term (+ optional ReLU)
#   out = A @ XWl + Xi @ W_r + b
# ----------------------------------------------------------------------------
def _sage_agg_kernel(a_ref, xwl_ref, xi_ref, wr_ref, b_ref, o_ref, acc_ref,
                     *, apply_relu):
    # grid = (row tiles, K/neighbor tiles)
    # A: (tm, tk)   XWl: (tk, Fout)   Xi: (tm, Fin)
    # Wr: (Fin, Fout)   b: (1, Fout)   O: (tm, Fout)   acc: (tm, Fout) f32
    k = pl.program_id(1)

    @pl.when(k == 0)
    def _():
        acc_ref[...] = jnp.zeros_like(acc_ref)

    # Accumulate the neighbor aggregation A @ (X @ Wl) over the neighbor axis.
    acc_ref[...] += jnp.dot(a_ref[...], xwl_ref[...],
                            preferred_element_type=jnp.float32)

    @pl.when(k == pl.num_programs(1) - 1)
    def _():
        out = (
            acc_ref[...]
            + jnp.dot(xi_ref[...], wr_ref[...], preferred_element_type=jnp.float32)
            + b_ref[...]
        )
        if apply_relu:
            out = jnp.maximum(out, 0.0)
        o_ref[...] = out.astype(o_ref.dtype)


def sage_conv(a_bf16, x_bf16, w_l, w_r, b, *, apply_relu, out_dtype,
              tile_m=1024, tile_k=2048):
    """One SAGEConv layer: project, then tiled A@(XWl) + Xi@Wr + b (+ReLU)."""
    n_pad = a_bf16.shape[0]
    f_in = x_bf16.shape[1]
    f_out = w_l.shape[1]

    # Prologue projection (separate small Pallas kernel).
    xwl = project(x_bf16, w_l)

    tm = _pick_row_tile(n_pad, tile_m)
    tk = _pick_tile(n_pad, tile_k)
    grid = (n_pad // tm, n_pad // tk)
    depth = 3 if grid[1] >= 3 else 2   # deeper buffering only helps on long K axes

    out_bytes = jnp.dtype(out_dtype).itemsize

    # Advisory cost hint for XLA scheduling around the layer calls.
    flops = 2 * n_pad * n_pad * f_out + 2 * n_pad * f_in * f_out
    bytes_accessed = (
        a_bf16.size * 2 + xwl.size * 2 + x_bf16.size * 2
        + w_r.size * 2 + b.size * 4 + n_pad * f_out * out_bytes
    )

    # VMEM footprint: buffered A / XWl streams, double-buffered Xi / weights /
    # bias / output, plus the f32 accumulator.
    footprint = (
        depth * tm * tk * 2
        + depth * tk * f_out * 2
        + 2 * tm * f_in * 2
        + 2 * f_in * f_out * 2
        + 2 * f_out * 4
        + 2 * tm * f_out * out_bytes
        + tm * f_out * 4
    )

    kernel = functools.partial(_sage_agg_kernel, apply_relu=apply_relu)
    return pl.pallas_call(
        kernel,
        out_shape=jax.ShapeDtypeStruct((n_pad, f_out), out_dtype),
        grid_spec=pltpu.PrefetchScalarGridSpec(
            num_scalar_prefetch=0,
            grid=grid,
            in_specs=[
                _input_spec((tm, tk), lambda i, k: (i, k), depth),      # A tile
                _input_spec((tk, f_out), lambda i, k: (k, 0), depth),   # XWl rows
                pl.BlockSpec((tm, f_in), lambda i, k: (i, 0)),          # X root rows
                pl.BlockSpec((f_in, f_out), lambda i, k: (0, 0)),       # W_r
                pl.BlockSpec((1, f_out), lambda i, k: (0, 0)),          # bias
            ],
            out_specs=pl.BlockSpec((tm, f_out), lambda i, k: (i, 0)),
            scratch_shapes=[pltpu.VMEM((tm, f_out), jnp.float32)],
        ),
        compiler_params=pltpu.CompilerParams(
            dimension_semantics=("parallel", "arbitrary"),
            vmem_limit_bytes=_vmem_limit(footprint),
        ),
        cost_estimate=pl.CostEstimate(
            flops=flops, transcendentals=0, bytes_accessed=bytes_accessed),
    )(a_bf16, xwl, x_bf16, w_r, b)


# ----------------------------------------------------------------------------
# Graph / parameter preparation
# ----------------------------------------------------------------------------
def build_mean_aggregation(edge_index, num_nodes_pad):
    """Dense row-normalized aggregation: A[i, j] = 1/deg_in(i) for edge j->i."""
    # TODO(synk): replace with a CSR (row_ptr, col_idx) build for sparse graphs.
    src = edge_index[0]
    dst = edge_index[1]
    adj = jnp.zeros((num_nodes_pad, num_nodes_pad), dtype=jnp.float32)
    adj = adj.at[dst, src].add(1.0)
    deg = adj.sum(axis=1, keepdims=True)
    return adj / jnp.maximum(deg, 1.0)  # empty neighborhood -> zero row (PyG mean)


def init_params(key, in_channels, hidden_channels, out_channels):
    k = jax.random.split(key, 6)

    def lin(kk, fin, fout):
        scale = 1.0 / jnp.sqrt(jnp.float32(fin))
        return jax.random.uniform(kk, (fin, fout), jnp.float32, -scale, scale)

    return {
        # conv1: lin_l (neighbors, with bias), lin_r (root, no bias)
        "w_l1": lin(k[0], in_channels, hidden_channels),
        "b_l1": jax.random.uniform(k[1], (1, hidden_channels), jnp.float32, -0.1, 0.1),
        "w_r1": lin(k[2], in_channels, hidden_channels),
        # conv2
        "w_l2": lin(k[3], hidden_channels, out_channels),
        "b_l2": jax.random.uniform(k[4], (1, out_channels), jnp.float32, -0.1, 0.1),
        "w_r2": lin(k[5], hidden_channels, out_channels),
    }


def _pad2(a, rows, cols, dtype):
    out = jnp.zeros((rows, cols), dtype)
    return out.at[: a.shape[0], : a.shape[1]].set(a.astype(dtype))


def prepare_padded_params(params, fin_pad, fhid_pad, fout_pad):
    """Zero-pad feature dims to 128 lanes; weights in bf16, biases in f32."""
    return {
        "w_l1": _pad2(params["w_l1"], fin_pad, fhid_pad, jnp.bfloat16),
        "w_r1": _pad2(params["w_r1"], fin_pad, fhid_pad, jnp.bfloat16),
        "b_l1": _pad2(params["b_l1"], 1, fhid_pad, jnp.float32),
        "w_l2": _pad2(params["w_l2"], fhid_pad, fout_pad, jnp.bfloat16),
        "w_r2": _pad2(params["w_r2"], fhid_pad, fout_pad, jnp.bfloat16),
        "b_l2": _pad2(params["b_l2"], 1, fout_pad, jnp.float32),
    }


# ----------------------------------------------------------------------------
# GNNEncoder forward (two SAGEConv layers, ReLU between)
# ----------------------------------------------------------------------------
@functools.partial(jax.jit, static_argnames=("num_nodes", "out_channels"))
def gnn_encoder_forward(x_pad, a_bf16, params_pad, num_nodes, out_channels):
    # TODO(synk): fuse both layers into one pallas_call (A resident in VMEM)
    #             for graphs where n_pad^2 * 2B fits on-chip.
    h = sage_conv(a_bf16, x_pad,
                  params_pad["w_l1"], params_pad["w_r1"], params_pad["b_l1"],
                  apply_relu=True, out_dtype=jnp.bfloat16)
    out = sage_conv(a_bf16, h,
                    params_pad["w_l2"], params_pad["w_r2"], params_pad["b_l2"],
                    apply_relu=False, out_dtype=jnp.float32)
    return out[:num_nodes, :out_channels]


def reference_forward(x, a_f32, params):
    h = a_f32 @ x @ params["w_l1"] + params["b_l1"] + x @ params["w_r1"]
    h = jnp.maximum(h, 0.0)
    return a_f32 @ h @ params["w_l2"] + params["b_l2"] + h @ params["w_r2"]


if __name__ == "__main__":
    key = jax.random.PRNGKey(0)
    k_x, k_p = jax.random.split(key)

    num_nodes = 16
    in_channels = 8
    hidden_channels = 32
    out_channels = 16

    n_pad = _round_up(num_nodes, LANE)
    fin_pad = _round_up(in_channels, LANE)
    fhid_pad = _round_up(hidden_channels, LANE)
    fout_pad = _round_up(out_channels, LANE)

    # Deterministic node features.
    x = jax.random.normal(k_x, (num_nodes, in_channels), jnp.float32)
    x_pad = jnp.zeros((n_pad, fin_pad), jnp.float32).at[:num_nodes, :in_channels].set(x)
    x_pad = x_pad.astype(jnp.bfloat16)

    # Deterministic small graph: a ring plus a few chords.
    src = jnp.concatenate(
        [
            jnp.arange(num_nodes),                     # ring forward
            (jnp.arange(num_nodes) + 1) % num_nodes,   # ring backward
            jnp.array([0, 3, 7, 11]),                  # chords
        ]
    )
    dst = jnp.concatenate(
        [
            (jnp.arange(num_nodes) + 1) % num_nodes,
            jnp.arange(num_nodes),
            jnp.array([8, 12, 2, 5]),
        ]
    )
    edge_index = jnp.stack([src, dst]).astype(jnp.int32)

    a_f32 = build_mean_aggregation(edge_index, n_pad)
    a_bf16 = a_f32.astype(jnp.bfloat16)

    params = init_params(k_p, in_channels, hidden_channels, out_channels)
    params_pad = prepare_padded_params(params, fin_pad, fhid_pad, fout_pad)

    out = gnn_encoder_forward(x_pad, a_bf16, params_pad, num_nodes, out_channels)
    jax.block_until_ready(out)
    assert out.shape == (num_nodes, out_channels)

    # Numerical sanity check vs. pure-JAX f32 reference (bf16 MXU-input tolerance).
    ref = reference_forward(x, a_f32[:num_nodes, :num_nodes], params)
    max_err = float(jnp.max(jnp.abs(out - ref)))
    assert max_err < 1e-1, f"max abs error {max_err}"

    print("KERNEL_OK")
</pallas_src>

<mosaic_0001>
module attributes {stable_mosaic.version = 11 : i64} {
  func.func @_sage_agg_kernel(%arg0: i32, %arg1: i32, %arg2: memref<128x128xbf16, #tpu.memory_space<vmem>>, %arg3: memref<128x128xbf16, #tpu.memory_space<vmem>>, %arg4: memref<128x128xbf16, #tpu.memory_space<vmem>>, %arg5: memref<128x128xbf16, #tpu.memory_space<vmem>>, %arg6: memref<1x128xf32, #tpu.memory_space<vmem>>, %arg7: memref<128x128xf32, #tpu.memory_space<vmem>>, %arg8: memref<128x128xf32, #tpu.memory_space<vmem>>) attributes {dimension_semantics = [#tpu.dimension_semantics<parallel>, #tpu.dimension_semantics<arbitrary>], iteration_bounds = array<i64: 1, 1>, scalar_prefetch = 0 : i64, scratch_operands = 1 : i64, tpu.core_type = #tpu.core_type<tc>, window_params = [{transform_indices = @transform_0, window_bounds = array<i64: 128, 128>}, {transform_indices = @transform_1, window_bounds = array<i64: 128, 128>}, {transform_indices = @transform_2, window_bounds = array<i64: 128, 128>}, {pipeline_mode = #tpu.pipeline_mode<synchronous>, transform_indices = @transform_3, window_bounds = array<i64: 128, 128>}, {pipeline_mode = #tpu.pipeline_mode<synchronous>, transform_indices = @transform_4, window_bounds = array<i64: 1, 128>}, {transform_indices = @transform_5, window_bounds = array<i64: 128, 128>}]} {
    %c0_i32 = arith.constant 0 : i32
    %0 = arith.cmpi eq, %arg1, %c0_i32 : i32
    %1 = arith.extui %0 : i1 to i32
    %c0_i32_0 = arith.constant 0 : i32
    %2 = arith.cmpi ne, %1, %c0_i32_0 : i32
    scf.if %2 {
      %cst_10 = arith.constant 0.000000e+00 : f32
      %12 = vector.broadcast %cst_10 : f32 to vector<128x128xf32>
      %c0_11 = arith.constant 0 : index
      %c0_12 = arith.constant 0 : index
      %13 = vector.load %arg8[%c0_11, %c0_12] : memref<128x128xf32, #tpu.memory_space<vmem>>, vector<128x128xf32>
      tpu.vector_store %arg8[%c0_11, %c0_12], %12 {strides = array<i32>} : memref<128x128xf32, #tpu.memory_space<vmem>>, vector<128x128xf32>,
    } else {
    }
    %c0 = arith.constant 0 : index
    %c0_1 = arith.constant 0 : index
    %3 = vector.load %arg8[%c0, %c0_1] : memref<128x128xf32, #tpu.memory_space<vmem>>, vector<128x128xf32>
    %c0_2 = arith.constant 0 : index
    %c0_3 = arith.constant 0 : index
    %4 = vector.load %arg2[%c0_2, %c0_3] : memref<128x128xbf16, #tpu.memory_space<vmem>>, vector<128x128xbf16>
    %c0_4 = arith.constant 0 : index
    %c0_5 = arith.constant 0 : index
    %5 = vector.load %arg3[%c0_4, %c0_5] : memref<128x128xbf16, #tpu.memory_space<vmem>>, vector<128x128xbf16>
    %cst = arith.constant dense<0.000000e+00> : vector<128x128xf32>
    %6 = tpu.matmul %4, %5, %cst {dimension_numbers = #tpu.dot_dimension_numbers<[1], [0], [0], [1], [0, 0, 1, 1], [], []>} : vector<128x128xbf16>, vector<128x128xbf16>, vector<128x128xf32> -> vector<128x128xf32>
    %7 = arith.addf %3, %6 : vector<128x128xf32>
    %c0_6 = arith.constant 0 : index
    %c0_7 = arith.constant 0 : index
    %8 = vector.load %arg8[%c0_6, %c0_7] : memref<128x128xf32, #tpu.memory_space<vmem>>, vector<128x128xf32>
    tpu.vector_store %arg8[%c0_6, %c0_7], %7 {strides = array<i32>} : memref<128x128xf32, #tpu.memory_space<vmem>>, vector<128x128xf32>,
    %c0_i32_8 = arith.constant 0 : i32
    %9 = arith.cmpi eq, %arg1, %c0_i32_8 : i32
    %10 = arith.extui %9 : i1 to i32
    %c0_i32_9 = arith.constant 0 : i32
    %11 = arith.cmpi ne, %10, %c0_i32_9 : i32
    scf.if %11 {
      %c0_10 = arith.constant 0 : index
      %c0_11 = arith.constant 0 : index
      %12 = vector.load %arg8[%c0_10, %c0_11] : memref<128x128xf32, #tpu.memory_space<vmem>>, vector<128x128xf32>
      %c0_12 = arith.constant 0 : index
      %c0_13 = arith.constant 0 : index
      %13 = vector.load %arg4[%c0_12, %c0_13] : memref<128x128xbf16, #tpu.memory_space<vmem>>, vector<128x128xbf16>
      %c0_14 = arith.constant 0 : index
      %c0_15 = arith.constant 0 : index
      %14 = vector.load %arg5[%c0_14, %c0_15] : memref<128x128xbf16, #tpu.memory_space<vmem>>, vector<128x128xbf16>
      %cst_16 = arith.constant dense<0.000000e+00> : vector<128x128xf32>
      %15 = tpu.matmul %13, %14, %cst_16 {dimension_numbers = #tpu.dot_dimension_numbers<[1], [0], [0], [1], [0, 0, 1, 1], [], []>} : vector<128x128xbf16>, vector<128x128xbf16>, vector<128x128xf32> -> vector<128x128xf32>
      %16 = arith.addf %12, %15 : vector<128x128xf32>
      %c0_17 = arith.constant 0 : index
      %c0_18 = arith.constant 0 : index
      %17 = vector.load %arg6[%c0_17, %c0_18] : memref<1x128xf32, #tpu.memory_space<vmem>>, vector<1x128xf32>
      %18 = vector.broadcast %17 : vector<1x128xf32> to vector<128x128xf32>
      %19 = arith.addf %16, %18 : vector<128x128xf32>
      %c0_19 = arith.constant 0 : index
      %c0_20 = arith.constant 0 : index
      %20 = vector.load %arg7[%c0_19, %c0_20] : memref<128x128xf32, #tpu.memory_space<vmem>>, vector<128x128xf32>
      tpu.vector_store %arg7[%c0_19, %c0_20], %19 {strides = array<i32>} : memref<128x128xf32, #tpu.memory_space<vmem>>, vector<128x128xf32>,
    } else {
    }
    return
  }
  func.func @transform_0(%arg0: i32, %arg1: i32) -> (i32, i32) {
    %c0_i32 = arith.constant 0 : i32
    return %arg0, %arg1 : i32, i32
  }
  func.func @transform_1(%arg0: i32, %arg1: i32) -> (i32, i32) {
    %c0_i32 = arith.constant 0 : i32
    %c0_i32_0 = arith.constant 0 : i32
    return %arg1, %c0_i32 : i32, i32
  }
  func.func @transform_2(%arg0: i32, %arg1: i32) -> (i32, i32) {
    %c0_i32 = arith.constant 0 : i32
    %c0_i32_0 = arith.constant 0 : i32
    return %arg0, %c0_i32 : i32, i32
  }
  func.func @transform_3(%arg0: i32, %arg1: i32) -> (i32, i32) {
    %c0_i32 = arith.constant 0 : i32
    %c0_i32_0 = arith.constant 0 : i32
    %c0_i32_1 = arith.constant 0 : i32
    return %c0_i32, %c0_i32_0 : i32, i32
  }
  func.func @transform_4(%arg0: i32, %arg1: i32) -> (i32, i32) {
    %c0_i32 = arith.constant 0 : i32
    %c0_i32_0 = arith.constant 0 : i32
    %c0_i32_1 = arith.constant 0 : i32
    return %c0_i32, %c0_i32_0 : i32, i32
  }
  func.func @transform_5(%arg0: i32, %arg1: i32) -> (i32, i32) {
    %c0_i32 = arith.constant 0 : i32
    %c0_i32_0 = arith.constant 0 : i32
    return %arg0, %c0_i32 : i32, i32
  }
}

module attributes {stable_mosaic.version = 11 : i64} {
  func.func @_project_kernel(%arg0: i32, %arg1: memref<128x128xbf16, #tpu.memory_space<vmem>>, %arg2: memref<128x128xbf16, #tpu.memory_space<vmem>>, %arg3: memref<128x128xbf16, #tpu.memory_space<vmem>>) attributes {dimension_semantics = [#tpu.dimension_semantics<parallel>], iteration_bounds = array<i64: 1>, scalar_prefetch = 0 : i64, scratch_operands = 0 : i64, tpu.core_type = #tpu.core_type<tc>, window_params = [{transform_indices = @transform_0, window_bounds = array<i64: 128, 128>}, {pipeline_mode = #tpu.pipeline_mode<synchronous>, transform_indices = @transform_1, window_bounds = array<i64: 128, 128>}, {transform_indices = @transform_2, window_bounds = array<i64: 128, 128>}]} {
    %c0 = arith.constant 0 : index
    %c0_0 = arith.constant 0 : index
    %0 = vector.load %arg1[%c0, %c0_0] : memref<128x128xbf16, #tpu.memory_space<vmem>>, vector<128x128xbf16>
    %c0_1 = arith.constant 0 : index
    %c0_2 = arith.constant 0 : index
    %1 = vector.load %arg2[%c0_1, %c0_2] : memref<128x128xbf16, #tpu.memory_space<vmem>>, vector<128x128xbf16>
    %cst = arith.constant dense<0.000000e+00> : vector<128x128xf32>
    %2 = tpu.matmul %0, %1, %cst {dimension_numbers = #tpu.dot_dimension_numbers<[1], [0], [0], [1], [0, 0, 1, 1], [], []>} : vector<128x128xbf16>, vector<128x128xbf16>, vector<128x128xf32> -> vector<128x128xf32>
    %3 = arith.truncf %2 : vector<128x128xf32> to vector<128x128xbf16>
    %c0_3 = arith.constant 0 : index
    %c0_4 = arith.constant 0 : index
    %4 = vector.load %arg3[%c0_3, %c0_4] : memref<128x128xbf16, #tpu.memory_space<vmem>>, vector<128x128xbf16>
    tpu.vector_store %arg3[%c0_3, %c0_4], %3 {strides = array<i32>} : memref<128x128xbf16, #tpu.memory_space<vmem>>, vector<128x128xbf16>,
    return
  }
  func.func @transform_0(%arg0: i32) -> (i32, i32) {
    %c0_i32 = arith.constant 0 : i32
    %c0_i32_0 = arith.constant 0 : i32
    return %arg0, %c0_i32 : i32, i32
  }
  func.func @transform_1(%arg0: i32) -> (i32, i32) {
    %c0_i32 = arith.constant 0 : i32
    %c0_i32_0 = arith.constant 0 : i32
    %c0_i32_1 = arith.constant 0 : i32
    return %c0_i32, %c0_i32_0 : i32, i32
  }
  func.func @transform_2(%arg0: i32) -> (i32, i32) {
    %c0_i32 = arith.constant 0 : i32
    %c0_i32_0 = arith.constant 0 : i32
    return %arg0, %c0_i32 : i32, i32
  }
}

module attributes {stable_mosaic.version = 11 : i64} {
  func.func @_sage_agg_kernel(%arg0: i32, %arg1: i32, %arg2: memref<128x128xbf16, #tpu.memory_space<vmem>>, %arg3: memref<128x128xbf16, #tpu.memory_space<vmem>>, %arg4: memref<128x128xbf16, #tpu.memory_space<vmem>>, %arg5: memref<128x128xbf16, #tpu.memory_space<vmem>>, %arg6: memref<1x128xf32, #tpu.memory_space<vmem>>, %arg7: memref<128x128xbf16, #tpu.memory_space<vmem>>, %arg8: memref<128x128xf32, #tpu.memory_space<vmem>>) attributes {dimension_semantics = [#tpu.dimension_semantics<parallel>, #tpu.dimension_semantics<arbitrary>], iteration_bounds = array<i64: 1, 1>, scalar_prefetch = 0 : i64, scratch_operands = 1 : i64, tpu.core_type = #tpu.core_type<tc>, window_params = [{transform_indices = @transform_0, window_bounds = array<i64: 128, 128>}, {transform_indices = @transform_1, window_bounds = array<i64: 128, 128>}, {transform_indices = @transform_2, window_bounds = array<i64: 128, 128>}, {pipeline_mode = #tpu.pipeline_mode<synchronous>, transform_indices = @transform_3, window_bounds = array<i64: 128, 128>}, {pipeline_mode = #tpu.pipeline_mode<synchronous>, transform_indices = @transform_4, window_bounds = array<i64: 1, 128>}, {transform_indices = @transform_5, window_bounds = array<i64: 128, 128>}]} {
    %c0_i32 = arith.constant 0 : i32
    %0 = arith.cmpi eq, %arg1, %c0_i32 : i32
    %1 = arith.extui %0 : i1 to i32
    %c0_i32_0 = arith.constant 0 : i32
    %2 = arith.cmpi ne, %1, %c0_i32_0 : i32
    scf.if %2 {
      %cst_10 = arith.constant 0.000000e+00 : f32
      %12 = vector.broadcast %cst_10 : f32 to vector<128x128xf32>
      %c0_11 = arith.constant 0 : index
      %c0_12 = arith.constant 0 : index
      %13 = vector.load %arg8[%c0_11, %c0_12] : memref<128x128xf32, #tpu.memory_space<vmem>>, vector<128x128xf32>
      tpu.vector_store %arg8[%c0_11, %c0_12], %12 {strides = array<i32>} : memref<128x128xf32, #tpu.memory_space<vmem>>, vector<128x128xf32>,
    } else {
    }
    %c0 = arith.constant 0 : index
    %c0_1 = arith.constant 0 : index
    %3 = vector.load %arg8[%c0, %c0_1] : memref<128x128xf32, #tpu.memory_space<vmem>>, vector<128x128xf32>
    %c0_2 = arith.constant 0 : index
    %c0_3 = arith.constant 0 : index
    %4 = vector.load %arg2[%c0_2, %c0_3] : memref<128x128xbf16, #tpu.memory_space<vmem>>, vector<128x128xbf16>
    %c0_4 = arith.constant 0 : index
    %c0_5 = arith.constant 0 : index
    %5 = vector.load %arg3[%c0_4, %c0_5] : memref<128x128xbf16, #tpu.memory_space<vmem>>, vector<128x128xbf16>
    %cst = arith.constant dense<0.000000e+00> : vector<128x128xf32>
    %6 = tpu.matmul %4, %5, %cst {dimension_numbers = #tpu.dot_dimension_numbers<[1], [0], [0], [1], [0, 0, 1, 1], [], []>} : vector<128x128xbf16>, vector<128x128xbf16>, vector<128x128xf32> -> vector<128x128xf32>
    %7 = arith.addf %3, %6 : vector<128x128xf32>
    %c0_6 = arith.constant 0 : index
    %c0_7 = arith.constant 0 : index
    %8 = vector.load %arg8[%c0_6, %c0_7] : memref<128x128xf32, #tpu.memory_space<vmem>>, vector<128x128xf32>
    tpu.vector_store %arg8[%c0_6, %c0_7], %7 {strides = array<i32>} : memref<128x128xf32, #tpu.memory_space<vmem>>, vector<128x128xf32>,
    %c0_i32_8 = arith.constant 0 : i32
    %9 = arith.cmpi eq, %arg1, %c0_i32_8 : i32
    %10 = arith.extui %9 : i1 to i32
    %c0_i32_9 = arith.constant 0 : i32
    %11 = arith.cmpi ne, %10, %c0_i32_9 : i32
    scf.if %11 {
      %c0_10 = arith.constant 0 : index
      %c0_11 = arith.constant 0 : index
      %12 = vector.load %arg8[%c0_10, %c0_11] : memref<128x128xf32, #tpu.memory_space<vmem>>, vector<128x128xf32>
      %c0_12 = arith.constant 0 : index
      %c0_13 = arith.constant 0 : index
      %13 = vector.load %arg4[%c0_12, %c0_13] : memref<128x128xbf16, #tpu.memory_space<vmem>>, vector<128x128xbf16>
      %c0_14 = arith.constant 0 : index
      %c0_15 = arith.constant 0 : index
      %14 = vector.load %arg5[%c0_14, %c0_15] : memref<128x128xbf16, #tpu.memory_space<vmem>>, vector<128x128xbf16>
      %cst_16 = arith.constant dense<0.000000e+00> : vector<128x128xf32>
      %15 = tpu.matmul %13, %14, %cst_16 {dimension_numbers = #tpu.dot_dimension_numbers<[1], [0], [0], [1], [0, 0, 1, 1], [], []>} : vector<128x128xbf16>, vector<128x128xbf16>, vector<128x128xf32> -> vector<128x128xf32>
      %16 = arith.addf %12, %15 : vector<128x128xf32>
      %c0_17 = arith.constant 0 : index
      %c0_18 = arith.constant 0 : index
      %17 = vector.load %arg6[%c0_17, %c0_18] : memref<1x128xf32, #tpu.memory_space<vmem>>, vector<1x128xf32>
      %18 = vector.broadcast %17 : vector<1x128xf32> to vector<128x128xf32>
      %19 = arith.addf %16, %18 : vector<128x128xf32>
      %cst_19 = arith.constant 0.000000e+00 : f32
      %20 = vector.broadcast %cst_19 : f32 to vector<128x128xf32>
      %21 = arith.maximumf %19, %20 : vector<128x128xf32>
      %22 = arith.truncf %21 : vector<128x128xf32> to vector<128x128xbf16>
      %c0_20 = arith.constant 0 : index
      %c0_21 = arith.constant 0 : index
      %23 = vector.load %arg7[%c0_20, %c0_21] : memref<128x128xbf16, #tpu.memory_space<vmem>>, vector<128x128xbf16>
      tpu.vector_store %arg7[%c0_20, %c0_21], %22 {strides = array<i32>} : memref<128x128xbf16, #tpu.memory_space<vmem>>, vector<128x128xbf16>,
    } else {
    }
    return
  }
  func.func @transform_0(%arg0: i32, %arg1: i32) -> (i32, i32) {
    %c0_i32 = arith.constant 0 : i32
    return %arg0, %arg1 : i32, i32
  }
  func.func @transform_1(%arg0: i32, %arg1: i32) -> (i32, i32) {
    %c0_i32 = arith.constant 0 : i32
    %c0_i32_0 = arith.constant 0 : i32
    return %arg1, %c0_i32 : i32, i32
  }
  func.func @transform_2(%arg0: i32, %arg1: i32) -> (i32, i32) {
    %c0_i32 = arith.constant 0 : i32
    %c0_i32_0 = arith.constant 0 : i32
    return %arg0, %c0_i32 : i32, i32
  }
  func.func @transform_3(%arg0: i32, %arg1: i32) -> (i32, i32) {
    %c0_i32 = arith.constant 0 : i32
    %c0_i32_0 = arith.constant 0 : i32
    %c0_i32_1 = arith.constant 0 : i32
    return %c0_i32, %c0_i32_0 : i32, i32
  }
  func.func @transform_4(%arg0: i32, %arg1: i32) -> (i32, i32) {
    %c0_i32 = arith.constant 0 : i32
    %c0_i32_0 = arith.constant 0 : i32
    %c0_i32_1 = arith.constant 0 : i32
    return %c0_i32, %c0_i32_0 : i32, i32
  }
  func.func @transform_5(%arg0: i32, %arg1: i32) -> (i32, i32) {
    %c0_i32 = arith.constant 0 : i32
    %c0_i32_0 = arith.constant 0 : i32
    return %arg0, %c0_i32 : i32, i32
  }
}

module attributes {stable_mosaic.version = 11 : i64} {
  func.func @_project_kernel(%arg0: i32, %arg1: memref<128x128xbf16, #tpu.memory_space<vmem>>, %arg2: memref<128x128xbf16, #tpu.memory_space<vmem>>, %arg3: memref<128x128xbf16, #tpu.memory_space<vmem>>) attributes {dimension_semantics = [#tpu.dimension_semantics<parallel>], iteration_bounds = array<i64: 1>, scalar_prefetch = 0 : i64, scratch_operands = 0 : i64, tpu.core_type = #tpu.core_type<tc>, window_params = [{transform_indices = @transform_0, window_bounds = array<i64: 128, 128>}, {pipeline_mode = #tpu.pipeline_mode<synchronous>, transform_indices = @transform_1, window_bounds = array<i64: 128, 128>}, {transform_indices = @transform_2, window_bounds = array<i64: 128, 128>}]} {
    %c0 = arith.constant 0 : index
    %c0_0 = arith.constant 0 : index
    %0 = vector.load %arg1[%c0, %c0_0] : memref<128x128xbf16, #tpu.memory_space<vmem>>, vector<128x128xbf16>
    %c0_1 = arith.constant 0 : index
    %c0_2 = arith.constant 0 : index
    %1 = vector.load %arg2[%c0_1, %c0_2] : memref<128x128xbf16, #tpu.memory_space<vmem>>, vector<128x128xbf16>
    %cst = arith.constant dense<0.000000e+00> : vector<128x128xf32>
    %2 = tpu.matmul %0, %1, %cst {dimension_numbers = #tpu.dot_dimension_numbers<[1], [0], [0], [1], [0, 0, 1, 1], [], []>} : vector<128x128xbf16>, vector<128x128xbf16>, vector<128x128xf32> -> vector<128x128xf32>
    %3 = arith.truncf %2 : vector<128x128xf32> to vector<128x128xbf16>
    %c0_3 = arith.constant 0 : index
    %c0_4 = arith.constant 0 : index
    %4 = vector.load %arg3[%c0_3, %c0_4] : memref<128x128xbf16, #tpu.memory_space<vmem>>, vector<128x128xbf16>
    tpu.vector_store %arg3[%c0_3, %c0_4], %3 {strides = array<i32>} : memref<128x128xbf16, #tpu.memory_space<vmem>>, vector<128x128xbf16>,
    return
  }
  func.func @transform_0(%arg0: i32) -> (i32, i32) {
    %c0_i32 = arith.constant 0 : i32
    %c0_i32_0 = arith.constant 0 : i32
    return %arg0, %c0_i32 : i32, i32
  }
  func.func @transform_1(%arg0: i32) -> (i32, i32) {
    %c0_i32 = arith.constant 0 : i32
    %c0_i32_0 = arith.constant 0 : i32
    %c0_i32_1 = arith.constant 0 : i32
    return %c0_i32, %c0_i32_0 : i32, i32
  }
  func.func @transform_2(%arg0: i32) -> (i32, i32) {
    %c0_i32 = arith.constant 0 : i32
    %c0_i32_0 = arith.constant 0 : i32
    return %arg0, %c0_i32 : i32, i32
  }
}

</mosaic_0001>

<llo_original>
// kernel: gnn_encoder_forward.6
$region0: #{gnn_encoder_forward.6}
  #allocation0 [shape = 'u32[]', space=smem, size = 0x4, offset = 0x4, fixed_abs, tag = 'smem constant byte address 0x4 - core index']
  #allocation1 [shape = 'u32[144,128]{1,0:T(1,128)}', space=vmem, size = 0x12000, scoped, tag = 'internal scratch']
  %s0 = inlined_call_operand.vmem [shape: bf16[128,128], index: 0, kind: input, shape index: {}]
  %s1 = inlined_call_operand.vmem [shape: bf16[128,128], index: 1, kind: input, shape index: {}]
  %s2 = inlined_call_operand.vmem [shape: bf16[128,128], index: 2, kind: output, shape index: {}]
  %s3 = sld [smem:[#allocation0]]
  $region18: #{gnn_encoder_forward.6} parent=0
    _
  %s5 = ssub.s32 1, %s3
  %s6 = scalar_select 0, %s5, %s3
  // Predicated region
  $region2: #{gnn_encoder_forward.6} parent=0 // pred_check
    _
  $region3: #{gnn_encoder_forward.6} parent=0 // pred_check_branch
    %8 = sbr.rel (0) target = $region5
  $region4: #{gnn_encoder_forward.6} parent=0 // pred_region
    _
  $region5: #{gnn_encoder_forward.6} parent=0 // pred_fallthru
    _
  // Predicated region
  $region6: #{gnn_encoder_forward.6} parent=0 // pred_check
    _
  $region7: #{gnn_encoder_forward.6} parent=0 // pred_check_branch
    %10 = sbr.rel (0) target = $region9
  $region8: #{gnn_encoder_forward.6} parent=0 // pred_region
    _
  $region9: #{gnn_encoder_forward.6} parent=0 // pred_fallthru
    _
  %v12 = vld [vmem:[%s0] sm:$0xf]
  %v13 = vld [vmem:[%s0 + $0x4] sm:$0xf]
  %v14 = vld [vmem:[%s0 + $0x8] sm:$0xf]
  %v15 = vld [vmem:[%s0 + $0xc] sm:$0xf]
  %v16 = vld [vmem:[%s0 + $0x10] sm:$0xf]
  %v17 = vld [vmem:[%s0 + $0x14] sm:$0xf]
  %v18 = vld [vmem:[%s0 + $0x18] sm:$0xf]
  %v19 = vld [vmem:[%s0 + $0x1c] sm:$0xf]
  %v20 = vld [vmem:[%s0 + $0x20] sm:$0xf]
  %v21 = vld [vmem:[%s0 + $0x24] sm:$0xf]
  %v22 = vld [vmem:[%s0 + $0x28] sm:$0xf]
  %v23 = vld [vmem:[%s0 + $0x2c] sm:$0xf]
  %v24 = vld [vmem:[%s0 + $0x30] sm:$0xf]
  %v25 = vld [vmem:[%s0 + $0x34] sm:$0xf]
  %v26 = vld [vmem:[%s0 + $0x38] sm:$0xf]
  %v27 = vld [vmem:[%s0 + $0x3c] sm:$0xf]
  %v28 = vld [vmem:[%s1] sm:$0xf]
  %v29 = vld [vmem:[%s1 + $0x4] sm:$0xf]
  %v30 = vld [vmem:[%s1 + $0x8] sm:$0xf]
  %v31 = vld [vmem:[%s1 + $0xc] sm:$0xf]
  %v32 = vld [vmem:[%s1 + $0x10] sm:$0xf]
  %v33 = vld [vmem:[%s1 + $0x14] sm:$0xf]
  %v34 = vld [vmem:[%s1 + $0x18] sm:$0xf]
  %v35 = vld [vmem:[%s1 + $0x1c] sm:$0xf]
  %v36 = vld [vmem:[%s1 + $0x20] sm:$0xf]
  %v37 = vld [vmem:[%s1 + $0x24] sm:$0xf]
  %v38 = vld [vmem:[%s1 + $0x28] sm:$0xf]
  %v39 = vld [vmem:[%s1 + $0x2c] sm:$0xf]
  %v40 = vld [vmem:[%s1 + $0x30] sm:$0xf]
  %v41 = vld [vmem:[%s1 + $0x34] sm:$0xf]
  %v42 = vld [vmem:[%s1 + $0x38] sm:$0xf]
  %v43 = vld [vmem:[%s1 + $0x3c] sm:$0xf]
  %v60 = vunpack.c.l.b16 %v12
  %v61 = vunpack.c.l.b16 %v13
  %v62 = vunpack.c.l.b16 %v14
  %v63 = vunpack.c.l.b16 %v15
  %v64 = vunpack.c.l.b16 %v16
  %v65 = vunpack.c.l.b16 %v17
  %v66 = vunpack.c.l.b16 %v18
  %v67 = vunpack.c.l.b16 %v19
  %v68 = vunpack.c.l.b16 %v20
  %v69 = vunpack.c.l.b16 %v21
  %v70 = vunpack.c.l.b16 %v22
  %v71 = vunpack.c.l.b16 %v23
  %v72 = vunpack.c.l.b16 %v24
  %v73 = vunpack.c.l.b16 %v25
  %v74 = vunpack.c.l.b16 %v26
  %v75 = vunpack.c.l.b16 %v27
  %v76 = vpack.c.b16 %v61, %v60
  %v77 = vpack.c.b16 %v63, %v62
  %v78 = vpack.c.b16 %v65, %v64
  %v79 = vpack.c.b16 %v67, %v66
  %v80 = vpack.c.b16 %v69, %v68
  %v81 = vpack.c.b16 %v71, %v70
  %v82 = vpack.c.b16 %v73, %v72
  %v83 = vpack.c.b16 %v75, %v74
  %v108 = vunpack.c.l.b16 %v28
  %v109 = vunpack.c.l.b16 %v29
  %v110 = vunpack.c.l.b16 %v30
  %v111 = vunpack.c.l.b16 %v31
  %v112 = vunpack.c.l.b16 %v32
  %v113 = vunpack.c.l.b16 %v33
  %v114 = vunpack.c.l.b16 %v34
  %v115 = vunpack.c.l.b16 %v35
  %v116 = vunpack.c.l.b16 %v36
  %v117 = vunpack.c.l.b16 %v37
  %v118 = vunpack.c.l.b16 %v38
  %v119 = vunpack.c.l.b16 %v39
  %v120 = vunpack.c.l.b16 %v40
  %v121 = vunpack.c.l.b16 %v41
  %v122 = vunpack.c.l.b16 %v42
  %v123 = vunpack.c.l.b16 %v43
  %v124 = vpack.c.b16 %v109, %v108
  %v125 = vpack.c.b16 %v111, %v110
  %v126 = vpack.c.b16 %v113, %v112
  %v127 = vpack.c.b16 %v115, %v114
  %v128 = vpack.c.b16 %v117, %v116
  %v129 = vpack.c.b16 %v119, %v118
  %v130 = vpack.c.b16 %v121, %v120
  %v131 = vpack.c.b16 %v123, %v122
  %140 = vmatprep.subr.bf16.mxu0 0
  %141 = vmatpush1.bf16.msra.mxu0 %v124
  %142 = vmatprep.subr.bf16.mxu0 0
  %143 = vmatpush1.bf16.msra.mxu0 %v125
  %144 = vmatprep.subr.bf16.mxu0 0
  %145 = vmatpush1.bf16.msra.mxu0 %v126
  %146 = vmatprep.subr.bf16.mxu0 0
  %147 = vmatpush1.bf16.msra.mxu0 %v127
  %148 = vmatprep.subr.bf16.mxu0 0
  %149 = vmatpush1.bf16.msra.mxu0 %v128
  %150 = vmatprep.subr.bf16.mxu0 0
  %151 = vmatpush1.bf16.msra.mxu0 %v129
  %152 = vmatprep.subr.bf16.mxu0 0
  %153 = vmatpush1.bf16.msra.mxu0 %v130
  %154 = vmatprep.subr.bf16.mxu0 0
  %155 = vmatpush1.bf16.msra.mxu0 %v131
  %156 = vmatprep.subr.bf16.mxu0 0
  %157 = vmatpush1.bf16.msra.mxu0 0
  %158 = vmatprep.subr.bf16.mxu0 0
  %159 = vmatpush1.bf16.msra.mxu0 0
  %160 = vmatprep.subr.bf16.mxu0 0
  %161 = vmatpush1.bf16.msra.mxu0 0
  %162 = vmatprep.subr.bf16.mxu0 0
  %163 = vmatpush1.bf16.msra.mxu0 0
  %164 = vmatprep.subr.bf16.mxu0 0
  %165 = vmatpush1.bf16.msra.mxu0 0
  %166 = vmatprep.subr.bf16.mxu0 0
  %167 = vmatpush1.bf16.msra.mxu0 0
  %168 = vmatprep.subr.bf16.mxu0 0
  %169 = vmatpush1.bf16.msra.mxu0 0
  %170 = vmatprep.subr.bf16.mxu0 0
  %171 = vmatpush1.bf16.msra.mxu0 0
  %172 = vmatprep.mubr.bf16.mxu0 0
  %173 = vmatmul.mubr.bf16.gmra.mrb[0].mxu0 %v76
  %v174 = vpop.f32.mrb[0].mxu0
  %v175 = vadd.f32 0.0, %v174
  %v176 = vpop.f32.mrb[0].mxu0
  %v177 = vpop.f32.mrb[0].mxu0
  %v178 = vadd.f32 0.0, %v177
  %v179 = vpop.f32.mrb[0].mxu0
  %180 = vmatprep.mubr.bf16.mxu0 0
  %181 = vmatmul.mubr.bf16.gmra.mrb[0].mxu0 %v77
  %v182 = vpop.f32.mrb[0].mxu0
  %v183 = vadd.f32 0.0, %v182
  %v184 = vpop.f32.mrb[0].mxu0
  %v185 = vpop.f32.mrb[0].mxu0
  %v186 = vadd.f32 0.0, %v185
  %v187 = vpop.f32.mrb[0].mxu0
  %188 = vmatprep.mubr.bf16.mxu0 0
  %189 = vmatmul.mubr.bf16.gmra.mrb[0].mxu0 %v78
  %v190 = vpop.f32.mrb[0].mxu0
  %v191 = vadd.f32 0.0, %v190
  %v192 = vpop.f32.mrb[0].mxu0
  %v193 = vpop.f32.mrb[0].mxu0
  %v194 = vadd.f32 0.0, %v193
  %v195 = vpop.f32.mrb[0].mxu0
  %196 = vmatprep.mubr.bf16.mxu0 0
  %197 = vmatmul.mubr.bf16.gmra.mrb[0].mxu0 %v79
  %v198 = vpop.f32.mrb[0].mxu0
  %v199 = vadd.f32 0.0, %v198
  %v200 = vpop.f32.mrb[0].mxu0
  %v201 = vpop.f32.mrb[0].mxu0
  %v202 = vadd.f32 0.0, %v201
  %v203 = vpop.f32.mrb[0].mxu0
  %204 = vmatprep.mubr.bf16.mxu0 0
  %205 = vmatmul.mubr.bf16.gmra.mrb[0].mxu0 %v80
  %v206 = vpop.f32.mrb[0].mxu0
  %v207 = vadd.f32 0.0, %v206
  %v208 = vpop.f32.mrb[0].mxu0
  %v209 = vpop.f32.mrb[0].mxu0
  %v210 = vadd.f32 0.0, %v209
  %v211 = vpop.f32.mrb[0].mxu0
  %212 = vmatprep.mubr.bf16.mxu0 0
  %213 = vmatmul.mubr.bf16.gmra.mrb[0].mxu0 %v81
  %v214 = vpop.f32.mrb[0].mxu0
  %v215 = vadd.f32 0.0, %v214
  %v216 = vpop.f32.mrb[0].mxu0
  %v217 = vpop.f32.mrb[0].mxu0
  %v218 = vadd.f32 0.0, %v217
  %v219 = vpop.f32.mrb[0].mxu0
  %220 = vmatprep.mubr.bf16.mxu0 0
  %221 = vmatmul.mubr.bf16.gmra.mrb[0].mxu0 %v82
  %v222 = vpop.f32.mrb[0].mxu0
  %v223 = vadd.f32 0.0, %v222
  %v224 = vpop.f32.mrb[0].mxu0
  %v225 = vpop.f32.mrb[0].mxu0
  %v226 = vadd.f32 0.0, %v225
  %v227 = vpop.f32.mrb[0].mxu0
  %228 = vmatprep.mubr.bf16.mxu0 0
  %229 = vmatmul.mubr.bf16.gmra.mrb[0].mxu0 %v83
  %v230 = vpop.f32.mrb[0].mxu0
  %v231 = vadd.f32 0.0, %v230
  %v232 = vpop.f32.mrb[0].mxu0
  %v233 = vpop.f32.mrb[0].mxu0
  %v234 = vadd.f32 0.0, %v233
  %v235 = vpop.f32.mrb[0].mxu0
  %236 = vdwg.mxu0
  %v237 = vpack.c.bf16 %v178, %v175
  %v238 = vpack.c.bf16 %v186, %v183
  %v239 = vpack.c.bf16 %v194, %v191
  %v240 = vpack.c.bf16 %v202, %v199
  %v241 = vpack.c.bf16 %v210, %v207
  %v242 = vpack.c.bf16 %v218, %v215
  %v243 = vpack.c.bf16 %v226, %v223
  %v244 = vpack.c.bf16 %v234, %v231
  %v253 = vunpack.c.l.b16 %v237
  %v254 = vunpack.c.h.b16 %v237
  %v255 = vunpack.c.l.b16 %v238
  %v256 = vunpack.c.h.b16 %v238
  %v257 = vunpack.c.l.b16 %v239
  %v258 = vunpack.c.h.b16 %v239
  %v259 = vunpack.c.l.b16 %v240
  %v260 = vunpack.c.h.b16 %v240
  %v261 = vunpack.c.l.b16 %v241
  %v262 = vunpack.c.h.b16 %v241
  %v263 = vunpack.c.l.b16 %v242
  %v264 = vunpack.c.h.b16 %v242
  %v265 = vunpack.c.l.b16 %v243
  %v266 = vunpack.c.h.b16 %v243
  %v267 = vunpack.c.l.b16 %v244
  %v268 = vunpack.c.h.b16 %v244
  %v269 = vpack.c.b16 %v253, %v253
  %v270 = vpack.c.b16 %v254, %v254
  %v271 = vpack.c.b16 %v255, %v255
  %v272 = vpack.c.b16 %v256, %v256
  %v273 = vpack.c.b16 %v257, %v257
  %v274 = vpack.c.b16 %v258, %v258
  %v275 = vpack.c.b16 %v259, %v259
  %v276 = vpack.c.b16 %v260, %v260
  %v277 = vpack.c.b16 %v261, %v261
  %v278 = vpack.c.b16 %v262, %v262
  %v279 = vpack.c.b16 %v263, %v263
  %v280 = vpack.c.b16 %v264, %v264
  %v281 = vpack.c.b16 %v265, %v265
  %v282 = vpack.c.b16 %v266, %v266
  %v283 = vpack.c.b16 %v267, %v267
  %v284 = vpack.c.b16 %v268, %v268
  %301 = vst [vmem:[%s2] sm:$0xf] %v269
  %302 = vst [vmem:[%s2 + $0x4] sm:$0xf] %v270
  %303 = vst [vmem:[%s2 + $0x8] sm:$0xf] %v271
  %304 = vst [vmem:[%s2 + $0xc] sm:$0xf] %v272
  %305 = vst [vmem:[%s2 + $0x10] sm:$0xf] %v273
  %306 = vst [vmem:[%s2 + $0x14] sm:$0xf] %v274
  %307 = vst [vmem:[%s2 + $0x18] sm:$0xf] %v275
  %308 = vst [vmem:[%s2 + $0x1c] sm:$0xf] %v276
  %309 = vst [vmem:[%s2 + $0x20] sm:$0xf] %v277
  %310 = vst [vmem:[%s2 + $0x24] sm:$0xf] %v278
  %311 = vst [vmem:[%s2 + $0x28] sm:$0xf] %v279
  %312 = vst [vmem:[%s2 + $0x2c] sm:$0xf] %v280
  %313 = vst [vmem:[%s2 + $0x30] sm:$0xf] %v281
  %314 = vst [vmem:[%s2 + $0x34] sm:$0xf] %v282
  %315 = vst [vmem:[%s2 + $0x38] sm:$0xf] %v283
  %316 = vst [vmem:[%s2 + $0x3c] sm:$0xf] %v284
  // Predicated region
  $region10: #{gnn_encoder_forward.6} parent=0 // pred_check
    _
  $region11: #{gnn_encoder_forward.6} parent=0 // pred_check_branch
    %318 = sbr.rel (0) target = $region13
  $region12: #{gnn_encoder_forward.6} parent=0 // pred_region
    _
  $region13: #{gnn_encoder_forward.6} parent=0 // pred_fallthru
    _
  // Predicated region
  $region14: #{gnn_encoder_forward.6} parent=0 // pred_check
    _
  $region15: #{gnn_encoder_forward.6} parent=0 // pred_check_branch
    %320 = sbr.rel (0) target = $region17
  $region16: #{gnn_encoder_forward.6} parent=0 // pred_region
    _
  $region17: #{gnn_encoder_forward.6} parent=0 // pred_fallthru
    _

// kernel: gnn_encoder_forward.4
$region0: #{gnn_encoder_forward.4}
  #allocation0 [shape = 'u32[]', space=smem, size = 0x4, offset = 0x4, fixed_abs, tag = 'smem constant byte address 0x4 - core index']
  #allocation1 [shape = 'u32[144,128]{1,0:T(1,128)}', space=vmem, size = 0x12000, scoped, tag = 'internal scratch']
  %s0 = inlined_call_operand.hbm [shape: bf16[128,128], index: 0, kind: input, shape index: {}]
  %s1 = inlined_call_operand.hbm [shape: bf16[128,128], index: 1, kind: input, shape index: {}]
  %s2 = inlined_call_operand.vmem [shape: bf16[128,128], index: 2, kind: output, shape index: {}]
  %s3 = sld [smem:[#allocation0]]
  $region26: #{gnn_encoder_forward.4} parent=0
    _
  %s5 = ssub.s32 1, %s3
  %s6 = scalar_select 0, %s5, %s3
  $region1: #{gnn_encoder_forward.4} parent=0
    #allocation2 [shape = 'u8[32768]{0}', space=vmem, size = 0x8000, scoped, tag = 'input window, operand 0, single buffered']
    #allocation3 [shape = 's32[1]{0}', space=sflag, size = 0x4, scoped, tag = 'scoped memory for gnn_encoder_forward.4']
    #allocation4 [shape = 'u8[32768]{0}', space=vmem, size = 0x8000, scoped, tag = 'input window, operand 1, single buffered']
    #allocation5 [shape = 's32[1]{0}', space=sflag, size = 0x4, scoped, tag = 'scoped memory for gnn_encoder_forward.4']
    %7 = vsyncpa [#allocation3], 0
    %8 = vsyncpa [#allocation5], 0
    // Predicated region
    $region2: #{gnn_encoder_forward.4} parent=1 // pred_check
      _
    $region3: #{gnn_encoder_forward.4} parent=1 // pred_check_branch
      %10 = sbr.rel (0) target = $region5
    $region4: #{gnn_encoder_forward.4} parent=1 // pred_region
      %s12 = ssub.s32 1024, 1024
      %13 = vsyncadd [#allocation3], %s12
      %s14 = sshll.u32 [#allocation2], 4
      %s15 = int_to_ptr.vmem [resolvable:$true] %s14
      %20 = dma.hbm_to_vmem [thread:$0]  %s0, 1024, %s15, [#allocation3], 64, 64, 4
    $region5: #{gnn_encoder_forward.4} parent=1 // pred_fallthru
      _
    // Predicated region
    $region6: #{gnn_encoder_forward.4} parent=1 // pred_check
      _
    $region7: #{gnn_encoder_forward.4} parent=1 // pred_check_branch
      %22 = sbr.rel (0) target = $region9
    $region8: #{gnn_encoder_forward.4} parent=1 // pred_region
      %s24 = ssub.s32 1024, 1024
      %25 = vsyncadd [#allocation5], %s24
      %s26 = sshll.u32 [#allocation4], 4
      %s27 = int_to_ptr.vmem [resolvable:$true] %s26
      %32 = dma.hbm_to_vmem [thread:$0]  %s1, 1024, %s27, [#allocation5], 64, 64, 4
    $region9: #{gnn_encoder_forward.4} parent=1 // pred_fallthru
      _
    // Predicated region
    $region10: #{gnn_encoder_forward.4} parent=1 // pred_check
      _
    $region11: #{gnn_encoder_forward.4} parent=1 // pred_check_branch
      %34 = sbr.rel (0) target = $region13
    $region12: #{gnn_encoder_forward.4} parent=1 // pred_region
      %35 = dma.done [#allocation3], 1024
    $region13: #{gnn_encoder_forward.4} parent=1 // pred_fallthru
      _
    // Predicated region
    $region14: #{gnn_encoder_forward.4} parent=1 // pred_check
      _
    $region15: #{gnn_encoder_forward.4} parent=1 // pred_check_branch
      %37 = sbr.rel (0) target = $region17
    $region16: #{gnn_encoder_forward.4} parent=1 // pred_region
      %38 = dma.done [#allocation5], 1024
    $region17: #{gnn_encoder_forward.4} parent=1 // pred_fallthru
      _
    %v40 = vld [vmem:[#allocation2] sm:$0xf]
    %v41 = vld [vmem:[#allocation2 + $0x4] sm:$0xf]
    %v42 = vld [vmem:[#allocation2 + $0x8] sm:$0xf]
    %v43 = vld [vmem:[#allocation2 + $0xc] sm:$0xf]
    %v44 = vld [vmem:[#allocation2 + $0x10] sm:$0xf]
    %v45 = vld [vmem:[#allocation2 + $0x14] sm:$0xf]
    %v46 = vld [vmem:[#allocation2 + $0x18] sm:$0xf]
    %v47 = vld [vmem:[#allocation2 + $0x1c] sm:$0xf]
    %v48 = vld [vmem:[#allocation2 + $0x20] sm:$0xf]
    %v49 = vld [vmem:[#allocation2 + $0x24] sm:$0xf]
    %v50 = vld [vmem:[#allocation2 + $0x28] sm:$0xf]
    %v51 = vld [vmem:[#allocation2 + $0x2c] sm:$0xf]
    %v52 = vld [vmem:[#allocation2 + $0x30] sm:$0xf]
    %v53 = vld [vmem:[#allocation2 + $0x34] sm:$0xf]
    %v54 = vld [vmem:[#allocation2 + $0x38] sm:$0xf]
    %v55 = vld [vmem:[#allocation2 + $0x3c] sm:$0xf]
    %v56 = vld [vmem:[#allocation4] sm:$0xf]
    %v57 = vld [vmem:[#allocation4 + $0x4] sm:$0xf]
    %v58 = vld [vmem:[#allocation4 + $0x8] sm:$0xf]
    %v59 = vld [vmem:[#allocation4 + $0xc] sm:$0xf]
    %v60 = vld [vmem:[#allocation4 + $0x10] sm:$0xf]
    %v61 = vld [vmem:[#allocation4 + $0x14] sm:$0xf]
    %v62 = vld [vmem:[#allocation4 + $0x18] sm:$0xf]
    %v63 = vld [vmem:[#allocation4 + $0x1c] sm:$0xf]
    %v64 = vld [vmem:[#allocation4 + $0x20] sm:$0xf]
    %v65 = vld [vmem:[#allocation4 + $0x24] sm:$0xf]
    %v66 = vld [vmem:[#allocation4 + $0x28] sm:$0xf]
    %v67 = vld [vmem:[#allocation4 + $0x2c] sm:$0xf]
    %v68 = vld [vmem:[#allocation4 + $0x30] sm:$0xf]
    %v69 = vld [vmem:[#allocation4 + $0x34] sm:$0xf]
    %v70 = vld [vmem:[#allocation4 + $0x38] sm:$0xf]
    %v71 = vld [vmem:[#allocation4 + $0x3c] sm:$0xf]
    %v88 = vunpack.c.l.b16 %v40
    %v89 = vunpack.c.l.b16 %v41
    %v90 = vunpack.c.l.b16 %v42
    %v91 = vunpack.c.l.b16 %v43
    %v92 = vunpack.c.l.b16 %v44
    %v93 = vunpack.c.l.b16 %v45
    %v94 = vunpack.c.l.b16 %v46
    %v95 = vunpack.c.l.b16 %v47
    %v96 = vunpack.c.l.b16 %v48
    %v97 = vunpack.c.l.b16 %v49
    %v98 = vunpack.c.l.b16 %v50
    %v99 = vunpack.c.l.b16 %v51
    %v100 = vunpack.c.l.b16 %v52
    %v101 = vunpack.c.l.b16 %v53
    %v102 = vunpack.c.l.b16 %v54
    %v103 = vunpack.c.l.b16 %v55
    %v104 = vpack.c.b16 %v89, %v88
    %v105 = vpack.c.b16 %v91, %v90
    %v106 = vpack.c.b16 %v93, %v92
    %v107 = vpack.c.b16 %v95, %v94
    %v108 = vpack.c.b16 %v97, %v96
    %v109 = vpack.c.b16 %v99, %v98
    %v110 = vpack.c.b16 %v101, %v100
    %v111 = vpack.c.b16 %v103, %v102
    %v136 = vunpack.c.l.b16 %v56
    %v137 = vunpack.c.l.b16 %v57
    %v138 = vunpack.c.l.b16 %v58
    %v139 = vunpack.c.l.b16 %v59
    %v140 = vunpack.c.l.b16 %v60
    %v141 = vunpack.c.l.b16 %v61
    %v142 = vunpack.c.l.b16 %v62
    %v143 = vunpack.c.l.b16 %v63
    %v144 = vunpack.c.l.b16 %v64
    %v145 = vunpack.c.l.b16 %v65
    %v146 = vunpack.c.l.b16 %v66
    %v147 = vunpack.c.l.b16 %v67
    %v148 = vunpack.c.l.b16 %v68
    %v149 = vunpack.c.l.b16 %v69
    %v150 = vunpack.c.l.b16 %v70
    %v151 = vunpack.c.l.b16 %v71
    %v152 = vpack.c.b16 %v137, %v136
    %v153 = vpack.c.b16 %v139, %v138
    %v154 = vpack.c.b16 %v141, %v140
    %v155 = vpack.c.b16 %v143, %v142
    %v156 = vpack.c.b16 %v145, %v144
    %v157 = vpack.c.b16 %v147, %v146
    %v158 = vpack.c.b16 %v149, %v148
    %v159 = vpack.c.b16 %v151, %v150
    %168 = vmatprep.subr.bf16.mxu0 0
    %169 = vmatpush1.bf16.msra.mxu0 %v152
    %170 = vmatprep.subr.bf16.mxu0 0
    %171 = vmatpush1.bf16.msra.mxu0 %v153
    %172 = vmatprep.subr.bf16.mxu0 0
    %173 = vmatpush1.bf16.msra.mxu0 %v154
    %174 = vmatprep.subr.bf16.mxu0 0
    %175 = vmatpush1.bf16.msra.mxu0 %v155
    %176 = vmatprep.subr.bf16.mxu0 0
    %177 = vmatpush1.bf16.msra.mxu0 %v156
    %178 = vmatprep.subr.bf16.mxu0 0
    %179 = vmatpush1.bf16.msra.mxu0 %v157
    %180 = vmatprep.subr.bf16.mxu0 0
    %181 = vmatpush1.bf16.msra.mxu0 %v158
    %182 = vmatprep.subr.bf16.mxu0 0
    %183 = vmatpush1.bf16.msra.mxu0 %v159
    %184 = vmatprep.subr.bf16.mxu0 0
    %185 = vmatpush1.bf16.msra.mxu0 0
    %186 = vmatprep.subr.bf16.mxu0 0
    %187 = vmatpush1.bf16.msra.mxu0 0
    %188 = vmatprep.subr.bf16.mxu0 0
    %189 = vmatpush1.bf16.msra.mxu0 0
    %190 = vmatprep.subr.bf16.mxu0 0
    %191 = vmatpush1.bf16.msra.mxu0 0
    %192 = vmatprep.subr.bf16.mxu0 0
    %193 = vmatpush1.bf16.msra.mxu0 0
    %194 = vmatprep.subr.bf16.mxu0 0
    %195 = vmatpush1.bf16.msra.mxu0 0
    %196 = vmatprep.subr.bf16.mxu0 0
    %197 = vmatpush1.bf16.msra.mxu0 0
    %198 = vmatprep.subr.bf16.mxu0 0
    %199 = vmatpush1.bf16.msra.mxu0 0
    %200 = vmatprep.mubr.bf16.mxu0 0
    %201 = vmatmul.mubr.bf16.gmra.mrb[0].mxu0 %v104
    %v202 = vpop.f32.mrb[0].mxu0
    %v203 = vadd.f32 0.0, %v202
    %v204 = vpop.f32.mrb[0].mxu0
    %v205 = vpop.f32.mrb[0].mxu0
    %v206 = vadd.f32 0.0, %v205
    %v207 = vpop.f32.mrb[0].mxu0
    %208 = vmatprep.mubr.bf16.mxu0 0
    %209 = vmatmul.mubr.bf16.gmra.mrb[0].mxu0 %v105
    %v210 = vpop.f32.mrb[0].mxu0
    %v211 = vadd.f32 0.0, %v210
    %v212 = vpop.f32.mrb[0].mxu0
    %v213 = vpop.f32.mrb[0].mxu0
    %v214 = vadd.f32 0.0, %v213
    %v215 = vpop.f32.mrb[0].mxu0
    %216 = vmatprep.mubr.bf16.mxu0 0
    %217 = vmatmul.mubr.bf16.gmra.mrb[0].mxu0 %v106
    %v218 = vpop.f32.mrb[0].mxu0
    %v219 = vadd.f32 0.0, %v218
    %v220 = vpop.f32.mrb[0].mxu0
    %v221 = vpop.f32.mrb[0].mxu0
    %v222 = vadd.f32 0.0, %v221
    %v223 = vpop.f32.mrb[0].mxu0
    %224 = vmatprep.mubr.bf16.mxu0 0
    %225 = vmatmul.mubr.bf16.gmra.mrb[0].mxu0 %v107
    %v226 = vpop.f32.mrb[0].mxu0
    %v227 = vadd.f32 0.0, %v226
    %v228 = vpop.f32.mrb[0].mxu0
    %v229 = vpop.f32.mrb[0].mxu0
    %v230 = vadd.f32 0.0, %v229
    %v231 = vpop.f32.mrb[0].mxu0
    %232 = vmatprep.mubr.bf16.mxu0 0
    %233 = vmatmul.mubr.bf16.gmra.mrb[0].mxu0 %v108
    %v234 = vpop.f32.mrb[0].mxu0
    %v235 = vadd.f32 0.0, %v234
    %v236 = vpop.f32.mrb[0].mxu0
    %v237 = vpop.f32.mrb[0].mxu0
    %v238 = vadd.f32 0.0, %v237
    %v239 = vpop.f32.mrb[0].mxu0
    %240 = vmatprep.mubr.bf16.mxu0 0
    %241 = vmatmul.mubr.bf16.gmra.mrb[0].mxu0 %v109
    %v242 = vpop.f32.mrb[0].mxu0
    %v243 = vadd.f32 0.0, %v242
    %v244 = vpop.f32.mrb[0].mxu0
    %v245 = vpop.f32.mrb[0].mxu0
    %v246 = vadd.f32 0.0, %v245
    %v247 = vpop.f32.mrb[0].mxu0
    %248 = vmatprep.mubr.bf16.mxu0 0
    %249 = vmatmul.mubr.bf16.gmra.mrb[0].mxu0 %v110
    %v250 = vpop.f32.mrb[0].mxu0
    %v251 = vadd.f32 0.0, %v250
    %v252 = vpop.f32.mrb[0].mxu0
    %v253 = vpop.f32.mrb[0].mxu0
    %v254 = vadd.f32 0.0, %v253
    %v255 = vpop.f32.mrb[0].mxu0
    %256 = vmatprep.mubr.bf16.mxu0 0
    %257 = vmatmul.mubr.bf16.gmra.mrb[0].mxu0 %v111
    %v258 = vpop.f32.mrb[0].mxu0
    %v259 = vadd.f32 0.0, %v258
    %v260 = vpop.f32.mrb[0].mxu0
    %v261 = vpop.f32.mrb[0].mxu0
    %v262 = vadd.f32 0.0, %v261
    %v263 = vpop.f32.mrb[0].mxu0
    %264 = vdwg.mxu0
    %v265 = vpack.c.bf16 %v206, %v203
    %v266 = vpack.c.bf16 %v214, %v211
    %v267 = vpack.c.bf16 %v222, %v219
    %v268 = vpack.c.bf16 %v230, %v227
    %v269 = vpack.c.bf16 %v238, %v235
    %v270 = vpack.c.bf16 %v246, %v243
    %v271 = vpack.c.bf16 %v254, %v251
    %v272 = vpack.c.bf16 %v262, %v259
    %v281 = vunpack.c.l.b16 %v265
    %v282 = vunpack.c.h.b16 %v265
    %v283 = vunpack.c.l.b16 %v266
    %v284 = vunpack.c.h.b16 %v266
    %v285 = vunpack.c.l.b16 %v267
    %v286 = vunpack.c.h.b16 %v267
    %v287 = vunpack.c.l.b16 %v268
    %v288 = vunpack.c.h.b16 %v268
    %v289 = vunpack.c.l.b16 %v269
    %v290 = vunpack.c.h.b16 %v269
    %v291 = vunpack.c.l.b16 %v270
    %v292 = vunpack.c.h.b16 %v270
    %v293 = vunpack.c.l.b16 %v271
    %v294 = vunpack.c.h.b16 %v271
    %v295 = vunpack.c.l.b16 %v272
    %v296 = vunpack.c.h.b16 %v272
    %v297 = vpack.c.b16 %v281, %v281
    %v298 = vpack.c.b16 %v282, %v282
    %v299 = vpack.c.b16 %v283, %v283
    %v300 = vpack.c.b16 %v284, %v284
    %v301 = vpack.c.b16 %v285, %v285
    %v302 = vpack.c.b16 %v286, %v286
    %v303 = vpack.c.b16 %v287, %v287
    %v304 = vpack.c.b16 %v288, %v288
    %v305 = vpack.c.b16 %v289, %v289
    %v306 = vpack.c.b16 %v290, %v290
    %v307 = vpack.c.b16 %v291, %v291
    %v308 = vpack.c.b16 %v292, %v292
    %v309 = vpack.c.b16 %v293, %v293
    %v310 = vpack.c.b16 %v294, %v294
    %v311 = vpack.c.b16 %v295, %v295
    %v312 = vpack.c.b16 %v296, %v296
    %329 = vst [vmem:[%s2] sm:$0xf] %v297
    %330 = vst [vmem:[%s2 + $0x4] sm:$0xf] %v298
    %331 = vst [vmem:[%s2 + $0x8] sm:$0xf] %v299
    %332 = vst [vmem:[%s2 + $0xc] sm:$0xf] %v300
    %333 = vst [vmem:[%s2 + $0x10] sm:$0xf] %v301
    %334 = vst [vmem:[%s2 + $0x14] sm:$0xf] %v302
    %335 = vst [vmem:[%s2 + $0x18] sm:$0xf] %v303
    %336 = vst [vmem:[%s2 + $0x1c] sm:$0xf] %v304
    %337 = vst [vmem:[%s2 + $0x20] sm:$0xf] %v305
    %338 = vst [vmem:[%s2 + $0x24] sm:$0xf] %v306
    %339 = vst [vmem:[%s2 + $0x28] sm:$0xf] %v307
    %340 = vst [vmem:[%s2 + $0x2c] sm:$0xf] %v308
    %341 = vst [vmem:[%s2 + $0x30] sm:$0xf] %v309
    %342 = vst [vmem:[%s2 + $0x34] sm:$0xf] %v310
    %343 = vst [vmem:[%s2 + $0x38] sm:$0xf] %v311
    %344 = vst [vmem:[%s2 + $0x3c] sm:$0xf] %v312
    // Predicated region
    $region18: #{gnn_encoder_forward.4} parent=1 // pred_check
      _
    $region19: #{gnn_encoder_forward.4} parent=1 // pred_check_branch
      %346 = sbr.rel (0) target = $region21
    $region20: #{gnn_encoder_forward.4} parent=1 // pred_region
      _
    $region21: #{gnn_encoder_forward.4} parent=1 // pred_fallthru
      _
    // Predicated region
    $region22: #{gnn_encoder_forward.4} parent=1 // pred_check
      _
    $region23: #{gnn_encoder_forward.4} parent=1 // pred_check_branch
      %348 = sbr.rel (0) target = $region25
    $region24: #{gnn_encoder_forward.4} parent=1 // pred_region
      _
    $region25: #{gnn_encoder_forward.4} parent=1 // pred_fallthru
      _
    %349 = vsyncpa [#allocation3], 1
    %350 = vsyncpa [#allocation5], 1

// kernel: gnn_encoder_forward.7
$region0: #{gnn_encoder_forward.7}
  #allocation0 [shape = 'u32[]', space=smem, size = 0x4, offset = 0x4, fixed_abs, tag = 'smem constant byte address 0x4 - core index']
  #allocation1 [shape = 'u32[144,128]{1,0:T(1,128)}', space=vmem, size = 0x12000, scoped, tag = 'internal scratch']
  #allocation2 [shape = 'f32[128,128]{1,0:T(8,128)}', space=vmem, size = 0x10000, scoped, tag = 'scratch operand']
  %s0 = inlined_call_operand.vmem [shape: bf16[128,128], index: 0, kind: input, shape index: {}]
  %s1 = inlined_call_operand.vmem [shape: bf16[128,128], index: 1, kind: input, shape index: {}]
  %s2 = inlined_call_operand.vmem [shape: bf16[128,128], index: 2, kind: input, shape index: {}]
  %s3 = inlined_call_operand.vmem [shape: bf16[128,128], index: 3, kind: input, shape index: {}]
  %s4 = inlined_call_operand.vmem [shape: f32[1,128], index: 4, kind: input, shape index: {}]
  %s5 = inlined_call_operand.vmem [shape: f32[128,128], index: 5, kind: output, shape index: {}]
  %s6 = sld [smem:[#allocation0]]
  $region38: #{gnn_encoder_forward.7} parent=0
    _
  %s8 = ssub.s32 1, %s6
  %s9 = scalar_select 0, %s8, %s6
  // Predicated region
  $region2: #{gnn_encoder_forward.7} parent=0 // pred_check
    _
  $region3: #{gnn_encoder_forward.7} parent=0 // pred_check_branch
    %11 = sbr.rel (0) target = $region5
  $region4: #{gnn_encoder_forward.7} parent=0 // pred_region
    _
  $region5: #{gnn_encoder_forward.7} parent=0 // pred_fallthru
    _
  // Predicated region
  $region6: #{gnn_encoder_forward.7} parent=0 // pred_check
    _
  $region7: #{gnn_encoder_forward.7} parent=0 // pred_check_branch
    %13 = sbr.rel (0) target = $region9
  $region8: #{gnn_encoder_forward.7} parent=0 // pred_region
    _
  $region9: #{gnn_encoder_forward.7} parent=0 // pred_fallthru
    _
  // Predicated region
  $region10: #{gnn_encoder_forward.7} parent=0 // pred_check
    _
  $region11: #{gnn_encoder_forward.7} parent=0 // pred_check_branch
    %15 = sbr.rel (0) target = $region13
  $region12: #{gnn_encoder_forward.7} parent=0 // pred_region
    _
  $region13: #{gnn_encoder_forward.7} parent=0 // pred_fallthru
    _
  // Predicated region
  $region14: #{gnn_encoder_forward.7} parent=0 // pred_check
    _
  $region15: #{gnn_encoder_forward.7} parent=0 // pred_check_branch
    %17 = sbr.rel (0) target = $region17
  $region16: #{gnn_encoder_forward.7} parent=0 // pred_region
    _
  $region17: #{gnn_encoder_forward.7} parent=0 // pred_fallthru
    _
  // Predicated region
  $region18: #{gnn_encoder_forward.7} parent=0 // pred_check
    _
  $region19: #{gnn_encoder_forward.7} parent=0 // pred_check_branch
    %19 = sbr.rel (0) target = $region21
  $region20: #{gnn_encoder_forward.7} parent=0 // pred_region
    _
  $region21: #{gnn_encoder_forward.7} parent=0 // pred_fallthru
    _
  %p21 = scmp.eq.s32.totalorder 0, 0
  // Predicated region
  $region22: #{gnn_encoder_forward.7} parent=0 // pred_check
    %p22 = pneg %p21
  $region23: #{gnn_encoder_forward.7} parent=0 // pred_check_branch
    %24 = sbr.rel (%p22) target = $region25
  $region24: #{gnn_encoder_forward.7} parent=0 // pred_region
    %25 = vst [vmem:[#allocation2] sm:$0xff] 0.0
    %26 = vst [vmem:[#allocation2 + $0x8] sm:$0xff] 0.0
    %27 = vst [vmem:[#allocation2 + $0x10] sm:$0xff] 0.0
    %28 = vst [vmem:[#allocation2 + $0x18] sm:$0xff] 0.0
    %29 = vst [vmem:[#allocation2 + $0x20] sm:$0xff] 0.0
    %30 = vst [vmem:[#allocation2 + $0x28] sm:$0xff] 0.0
    %31 = vst [vmem:[#allocation2 + $0x30] sm:$0xff] 0.0
    %32 = vst [vmem:[#allocation2 + $0x38] sm:$0xff] 0.0
    %33 = vst [vmem:[#allocation2 + $0x40] sm:$0xff] 0.0
    %34 = vst [vmem:[#allocation2 + $0x48] sm:$0xff] 0.0
    %35 = vst [vmem:[#allocation2 + $0x50] sm:$0xff] 0.0
    %36 = vst [vmem:[#allocation2 + $0x58] sm:$0xff] 0.0
    %37 = vst [vmem:[#allocation2 + $0x60] sm:$0xff] 0.0
    %38 = vst [vmem:[#allocation2 + $0x68] sm:$0xff] 0.0
    %39 = vst [vmem:[#allocation2 + $0x70] sm:$0xff] 0.0
    %40 = vst [vmem:[#allocation2 + $0x78] sm:$0xff] 0.0
  $region25: #{gnn_encoder_forward.7} parent=0 // pred_fallthru
    _
  %v41 = vld [vmem:[#allocation2] sm:$0xff]
  %v42 = vld [vmem:[#allocation2 + $0x8] sm:$0xff]
  %v43 = vld [vmem:[#allocation2 + $0x10] sm:$0xff]
  %v44 = vld [vmem:[#allocation2 + $0x18] sm:$0xff]
  %v45 = vld [vmem:[#allocation2 + $0x20] sm:$0xff]
  %v46 = vld [vmem:[#allocation2 + $0x28] sm:$0xff]
  %v47 = vld [vmem:[#allocation2 + $0x30] sm:$0xff]
  %v48 = vld [vmem:[#allocation2 + $0x38] sm:$0xff]
  %v49 = vld [vmem:[#allocation2 + $0x40] sm:$0xff]
  %v50 = vld [vmem:[#allocation2 + $0x48] sm:$0xff]
  %v51 = vld [vmem:[#allocation2 + $0x50] sm:$0xff]
  %v52 = vld [vmem:[#allocation2 + $0x58] sm:$0xff]
  %v53 = vld [vmem:[#allocation2 + $0x60] sm:$0xff]
  %v54 = vld [vmem:[#allocation2 + $0x68] sm:$0xff]
  %v55 = vld [vmem:[#allocation2 + $0x70] sm:$0xff]
  %v56 = vld [vmem:[#allocation2 + $0x78] sm:$0xff]
  %v57 = vld [vmem:[%s0] sm:$0xf]
  %v58 = vld [vmem:[%s0 + $0x4] sm:$0xf]
  %v59 = vld [vmem:[%s0 + $0x8] sm:$0xf]
  %v60 = vld [vmem:[%s0 + $0xc] sm:$0xf]
  %v61 = vld [vmem:[%s0 + $0x10] sm:$0xf]
  %v62 = vld [vmem:[%s0 + $0x14] sm:$0xf]
  %v63 = vld [vmem:[%s0 + $0x18] sm:$0xf]
  %v64 = vld [vmem:[%s0 + $0x1c] sm:$0xf]
  %v65 = vld [vmem:[%s0 + $0x20] sm:$0xf]
  %v66 = vld [vmem:[%s0 + $0x24] sm:$0xf]
  %v67 = vld [vmem:[%s0 + $0x28] sm:$0xf]
  %v68 = vld [vmem:[%s0 + $0x2c] sm:$0xf]
  %v69 = vld [vmem:[%s0 + $0x30] sm:$0xf]
  %v70 = vld [vmem:[%s0 + $0x34] sm:$0xf]
  %v71 = vld [vmem:[%s0 + $0x38] sm:$0xf]
  %v72 = vld [vmem:[%s0 + $0x3c] sm:$0xf]
  %v73 = vld [vmem:[%s1] sm:$0xf]
  %v74 = vld [vmem:[%s1 + $0x4] sm:$0xf]
  %v75 = vld [vmem:[%s1 + $0x8] sm:$0xf]
  %v76 = vld [vmem:[%s1 + $0xc] sm:$0xf]
  %v77 = vld [vmem:[%s1 + $0x10] sm:$0xf]
  %v78 = vld [vmem:[%s1 + $0x14] sm:$0xf]
  %v79 = vld [vmem:[%s1 + $0x18] sm:$0xf]
  %v80 = vld [vmem:[%s1 + $0x1c] sm:$0xf]
  %v81 = vld [vmem:[%s1 + $0x20] sm:$0xf]
  %v82 = vld [vmem:[%s1 + $0x24] sm:$0xf]
  %v83 = vld [vmem:[%s1 + $0x28] sm:$0xf]
  %v84 = vld [vmem:[%s1 + $0x2c] sm:$0xf]
  %v85 = vld [vmem:[%s1 + $0x30] sm:$0xf]
  %v86 = vld [vmem:[%s1 + $0x34] sm:$0xf]
  %v87 = vld [vmem:[%s1 + $0x38] sm:$0xf]
  %v88 = vld [vmem:[%s1 + $0x3c] sm:$0xf]
  %v105 = vunpack.c.l.b16 %v57
  %v106 = vunpack.c.l.b16 %v58
  %v107 = vunpack.c.l.b16 %v59
  %v108 = vunpack.c.l.b16 %v60
  %v109 = vunpack.c.l.b16 %v61
  %v110 = vunpack.c.l.b16 %v62
  %v111 = vunpack.c.l.b16 %v63
  %v112 = vunpack.c.l.b16 %v64
  %v113 = vunpack.c.l.b16 %v65
  %v114 = vunpack.c.l.b16 %v66
  %v115 = vunpack.c.l.b16 %v67
  %v116 = vunpack.c.l.b16 %v68
  %v117 = vunpack.c.l.b16 %v69
  %v118 = vunpack.c.l.b16 %v70
  %v119 = vunpack.c.l.b16 %v71
  %v120 = vunpack.c.l.b16 %v72
  %v121 = vpack.c.b16 %v106, %v105
  %v122 = vpack.c.b16 %v108, %v107
  %v123 = vpack.c.b16 %v110, %v109
  %v124 = vpack.c.b16 %v112, %v111
  %v125 = vpack.c.b16 %v114, %v113
  %v126 = vpack.c.b16 %v116, %v115
  %v127 = vpack.c.b16 %v118, %v117
  %v128 = vpack.c.b16 %v120, %v119
  %v153 = vunpack.c.l.b16 %v73
  %v154 = vunpack.c.l.b16 %v74
  %v155 = vunpack.c.l.b16 %v75
  %v156 = vunpack.c.l.b16 %v76
  %v157 = vunpack.c.l.b16 %v77
  %v158 = vunpack.c.l.b16 %v78
  %v159 = vunpack.c.l.b16 %v79
  %v160 = vunpack.c.l.b16 %v80
  %v161 = vunpack.c.l.b16 %v81
  %v162 = vunpack.c.l.b16 %v82
  %v163 = vunpack.c.l.b16 %v83
  %v164 = vunpack.c.l.b16 %v84
  %v165 = vunpack.c.l.b16 %v85
  %v166 = vunpack.c.l.b16 %v86
  %v167 = vunpack.c.l.b16 %v87
  %v168 = vunpack.c.l.b16 %v88
  %v169 = vpack.c.b16 %v154, %v153
  %v170 = vpack.c.b16 %v156, %v155
  %v171 = vpack.c.b16 %v158, %v157
  %v172 = vpack.c.b16 %v160, %v159
  %v173 = vpack.c.b16 %v162, %v161
  %v174 = vpack.c.b16 %v164, %v163
  %v175 = vpack.c.b16 %v166, %v165
  %v176 = vpack.c.b16 %v168, %v167
  %185 = vmatprep.subr.bf16.mxu0 0
  %186 = vmatpush1.bf16.msra.mxu0 %v169
  %187 = vmatprep.subr.bf16.mxu0 0
  %188 = vmatpush1.bf16.msra.mxu0 %v170
  %189 = vmatprep.subr.bf16.mxu0 0
  %190 = vmatpush1.bf16.msra.mxu0 %v171
  %191 = vmatprep.subr.bf16.mxu0 0
  %192 = vmatpush1.bf16.msra.mxu0 %v172
  %193 = vmatprep.subr.bf16.mxu0 0
  %194 = vmatpush1.bf16.msra.mxu0 %v173
  %195 = vmatprep.subr.bf16.mxu0 0
  %196 = vmatpush1.bf16.msra.mxu0 %v174
  %197 = vmatprep.subr.bf16.mxu0 0
  %198 = vmatpush1.bf16.msra.mxu0 %v175
  %199 = vmatprep.subr.bf16.mxu0 0
  %200 = vmatpush1.bf16.msra.mxu0 %v176
  %201 = vmatprep.subr.bf16.mxu0 0
  %202 = vmatpush1.bf16.msra.mxu0 0
  %203 = vmatprep.subr.bf16.mxu0 0
  %204 = vmatpush1.bf16.msra.mxu0 0
  %205 = vmatprep.subr.bf16.mxu0 0
  %206 = vmatpush1.bf16.msra.mxu0 0
  %207 = vmatprep.subr.bf16.mxu0 0
  %208 = vmatpush1.bf16.msra.mxu0 0
  %209 = vmatprep.subr.bf16.mxu0 0
  %210 = vmatpush1.bf16.msra.mxu0 0
  %211 = vmatprep.subr.bf16.mxu0 0
  %212 = vmatpush1.bf16.msra.mxu0 0
  %213 = vmatprep.subr.bf16.mxu0 0
  %214 = vmatpush1.bf16.msra.mxu0 0
  %215 = vmatprep.subr.bf16.mxu0 0
  %216 = vmatpush1.bf16.msra.mxu0 0
  %217 = vmatprep.mubr.bf16.mxu0 0
  %218 = vmatmul.mubr.bf16.gmra.mrb[0].mxu0 %v121
  %v219 = vpop.f32.mrb[0].mxu0
  %v220 = vadd.f32 0.0, %v219
  %v221 = vpop.f32.mrb[0].mxu0
  %v222 = vpop.f32.mrb[0].mxu0
  %v223 = vadd.f32 0.0, %v222
  %v224 = vpop.f32.mrb[0].mxu0
  %225 = vmatprep.mubr.bf16.mxu0 0
  %226 = vmatmul.mubr.bf16.gmra.mrb[0].mxu0 %v122
  %v227 = vpop.f32.mrb[0].mxu0
  %v228 = vadd.f32 0.0, %v227
  %v229 = vpop.f32.mrb[0].mxu0
  %v230 = vpop.f32.mrb[0].mxu0
  %v231 = vadd.f32 0.0, %v230
  %v232 = vpop.f32.mrb[0].mxu0
  %233 = vmatprep.mubr.bf16.mxu0 0
  %234 = vmatmul.mubr.bf16.gmra.mrb[0].mxu0 %v123
  %v235 = vpop.f32.mrb[0].mxu0
  %v236 = vadd.f32 0.0, %v235
  %v237 = vpop.f32.mrb[0].mxu0
  %v238 = vpop.f32.mrb[0].mxu0
  %v239 = vadd.f32 0.0, %v238
  %v240 = vpop.f32.mrb[0].mxu0
  %241 = vmatprep.mubr.bf16.mxu0 0
  %242 = vmatmul.mubr.bf16.gmra.mrb[0].mxu0 %v124
  %v243 = vpop.f32.mrb[0].mxu0
  %v244 = vadd.f32 0.0, %v243
  %v245 = vpop.f32.mrb[0].mxu0
  %v246 = vpop.f32.mrb[0].mxu0
  %v247 = vadd.f32 0.0, %v246
  %v248 = vpop.f32.mrb[0].mxu0
  %249 = vmatprep.mubr.bf16.mxu0 0
  %250 = vmatmul.mubr.bf16.gmra.mrb[0].mxu0 %v125
  %v251 = vpop.f32.mrb[0].mxu0
  %v252 = vadd.f32 0.0, %v251
  %v253 = vpop.f32.mrb[0].mxu0
  %v254 = vpop.f32.mrb[0].mxu0
  %v255 = vadd.f32 0.0, %v254
  %v256 = vpop.f32.mrb[0].mxu0
  %257 = vmatprep.mubr.bf16.mxu0 0
  %258 = vmatmul.mubr.bf16.gmra.mrb[0].mxu0 %v126
  %v259 = vpop.f32.mrb[0].mxu0
  %v260 = vadd.f32 0.0, %v259
  %v261 = vpop.f32.mrb[0].mxu0
  %v262 = vpop.f32.mrb[0].mxu0
  %v263 = vadd.f32 0.0, %v262
  %v264 = vpop.f32.mrb[0].mxu0
  %265 = vmatprep.mubr.bf16.mxu0 0
  %266 = vmatmul.mubr.bf16.gmra.mrb[0].mxu0 %v127
  %v267 = vpop.f32.mrb[0].mxu0
  %v268 = vadd.f32 0.0, %v267
  %v269 = vpop.f32.mrb[0].mxu0
  %v270 = vpop.f32.mrb[0].mxu0
  %v271 = vadd.f32 0.0, %v270
  %v272 = vpop.f32.mrb[0].mxu0
  %273 = vmatprep.mubr.bf16.mxu0 0
  %274 = vmatmul.mubr.bf16.gmra.mrb[0].mxu0 %v128
  %v275 = vpop.f32.mrb[0].mxu0
  %v276 = vadd.f32 0.0, %v275
  %v277 = vpop.f32.mrb[0].mxu0
  %v278 = vpop.f32.mrb[0].mxu0
  %v279 = vadd.f32 0.0, %v278
  %v280 = vpop.f32.mrb[0].mxu0
  %281 = vdwg.mxu0
  %v282 = vadd.f32 %v41, %v220
  %v283 = vadd.f32 %v42, %v223
  %v284 = vadd.f32 %v43, %v228
  %v285 = vadd.f32 %v44, %v231
  %v286 = vadd.f32 %v45, %v236
  %v287 = vadd.f32 %v46, %v239
  %v288 = vadd.f32 %v47, %v244
  %v289 = vadd.f32 %v48, %v247
  %v290 = vadd.f32 %v49, %v252
  %v291 = vadd.f32 %v50, %v255
  %v292 = vadd.f32 %v51, %v260
  %v293 = vadd.f32 %v52, %v263
  %v294 = vadd.f32 %v53, %v268
  %v295 = vadd.f32 %v54, %v271
  %v296 = vadd.f32 %v55, %v276
  %v297 = vadd.f32 %v56, %v279
  %298 = vst [vmem:[#allocation2] sm:$0xff] %v282
  %299 = vst [vmem:[#allocation2 + $0x8] sm:$0xff] %v283
  %300 = vst [vmem:[#allocation2 + $0x10] sm:$0xff] %v284
  %301 = vst [vmem:[#allocation2 + $0x18] sm:$0xff] %v285
  %302 = vst [vmem:[#allocation2 + $0x20] sm:$0xff] %v286
  %303 = vst [vmem:[#allocation2 + $0x28] sm:$0xff] %v287
  %304 = vst [vmem:[#allocation2 + $0x30] sm:$0xff] %v288
  %305 = vst [vmem:[#allocation2 + $0x38] sm:$0xff] %v289
  %306 = vst [vmem:[#allocation2 + $0x40] sm:$0xff] %v290
  %307 = vst [vmem:[#allocation2 + $0x48] sm:$0xff] %v291
  %308 = vst [vmem:[#allocation2 + $0x50] sm:$0xff] %v292
  %309 = vst [vmem:[#allocation2 + $0x58] sm:$0xff] %v293
  %310 = vst [vmem:[#allocation2 + $0x60] sm:$0xff] %v294
  %311 = vst [vmem:[#allocation2 + $0x68] sm:$0xff] %v295
  %312 = vst [vmem:[#allocation2 + $0x70] sm:$0xff] %v296
  %313 = vst [vmem:[#allocation2 + $0x78] sm:$0xff] %v297
  // Predicated region
  $region26: #{gnn_encoder_forward.7} parent=0 // pred_check
    %p314 = pneg %p21
  $region27: #{gnn_encoder_forward.7} parent=0 // pred_check_branch
    %316 = sbr.rel (%p314) target = $region29
  $region28: #{gnn_encoder_forward.7} parent=0 // pred_region
    %v317 = vld [vmem:[#allocation2] sm:$0xff]
    %v318 = vld [vmem:[#allocation2 + $0x8] sm:$0xff]
    %v319 = vld [vmem:[#allocation2 + $0x10] sm:$0xff]
    %v320 = vld [vmem:[#allocation2 + $0x18] sm:$0xff]
    %v321 = vld [vmem:[#allocation2 + $0x20] sm:$0xff]
    %v322 = vld [vmem:[#allocation2 + $0x28] sm:$0xff]
    %v323 = vld [vmem:[#allocation2 + $0x30] sm:$0xff]
    %v324 = vld [vmem:[#allocation2 + $0x38] sm:$0xff]
    %v325 = vld [vmem:[#allocation2 + $0x40] sm:$0xff]
    %v326 = vld [vmem:[#allocation2 + $0x48] sm:$0xff]
    %v327 = vld [vmem:[#allocation2 + $0x50] sm:$0xff]
    %v328 = vld [vmem:[#allocation2 + $0x58] sm:$0xff]
    %v329 = vld [vmem:[#allocation2 + $0x60] sm:$0xff]
    %v330 = vld [vmem:[#allocation2 + $0x68] sm:$0xff]
    %v331 = vld [vmem:[#allocation2 + $0x70] sm:$0xff]
    %v332 = vld [vmem:[#allocation2 + $0x78] sm:$0xff]
    %v333 = vld [vmem:[%s2] sm:$0xf]
    %v334 = vld [vmem:[%s2 + $0x4] sm:$0xf]
    %v335 = vld [vmem:[%s2 + $0x8] sm:$0xf]
    %v336 = vld [vmem:[%s2 + $0xc] sm:$0xf]
    %v337 = vld [vmem:[%s2 + $0x10] sm:$0xf]
    %v338 = vld [vmem:[%s2 + $0x14] sm:$0xf]
    %v339 = vld [vmem:[%s2 + $0x18] sm:$0xf]
    %v340 = vld [vmem:[%s2 + $0x1c] sm:$0xf]
    %v341 = vld [vmem:[%s2 + $0x20] sm:$0xf]
    %v342 = vld [vmem:[%s2 + $0x24] sm:$0xf]
    %v343 = vld [vmem:[%s2 + $0x28] sm:$0xf]
    %v344 = vld [vmem:[%s2 + $0x2c] sm:$0xf]
    %v345 = vld [vmem:[%s2 + $0x30] sm:$0xf]
    %v346 = vld [vmem:[%s2 + $0x34] sm:$0xf]
    %v347 = vld [vmem:[%s2 + $0x38] sm:$0xf]
    %v348 = vld [vmem:[%s2 + $0x3c] sm:$0xf]
    %v349 = vld [vmem:[%s3] sm:$0xf]
    %v350 = vld [vmem:[%s3 + $0x4] sm:$0xf]
    %v351 = vld [vmem:[%s3 + $0x8] sm:$0xf]
    %v352 = vld [vmem:[%s3 + $0xc] sm:$0xf]
    %v353 = vld [vmem:[%s3 + $0x10] sm:$0xf]
    %v354 = vld [vmem:[%s3 + $0x14] sm:$0xf]
    %v355 = vld [vmem:[%s3 + $0x18] sm:$0xf]
    %v356 = vld [vmem:[%s3 + $0x1c] sm:$0xf]
    %v357 = vld [vmem:[%s3 + $0x20] sm:$0xf]
    %v358 = vld [vmem:[%s3 + $0x24] sm:$0xf]
    %v359 = vld [vmem:[%s3 + $0x28] sm:$0xf]
    %v360 = vld [vmem:[%s3 + $0x2c] sm:$0xf]
    %v361 = vld [vmem:[%s3 + $0x30] sm:$0xf]
    %v362 = vld [vmem:[%s3 + $0x34] sm:$0xf]
    %v363 = vld [vmem:[%s3 + $0x38] sm:$0xf]
    %v364 = vld [vmem:[%s3 + $0x3c] sm:$0xf]
    %v381 = vunpack.c.l.b16 %v333
    %v382 = vunpack.c.l.b16 %v334
    %v383 = vunpack.c.l.b16 %v335
    %v384 = vunpack.c.l.b16 %v336
    %v385 = vunpack.c.l.b16 %v337
    %v386 = vunpack.c.l.b16 %v338
    %v387 = vunpack.c.l.b16 %v339
    %v388 = vunpack.c.l.b16 %v340
    %v389 = vunpack.c.l.b16 %v341
    %v390 = vunpack.c.l.b16 %v342
    %v391 = vunpack.c.l.b16 %v343
    %v392 = vunpack.c.l.b16 %v344
    %v393 = vunpack.c.l.b16 %v345
    %v394 = vunpack.c.l.b16 %v346
    %v395 = vunpack.c.l.b16 %v347
    %v396 = vunpack.c.l.b16 %v348
    %v397 = vpack.c.b16 %v382, %v381
    %v398 = vpack.c.b16 %v384, %v383
    %v399 = vpack.c.b16 %v386, %v385
    %v400 = vpack.c.b16 %v388, %v387
    %v401 = vpack.c.b16 %v390, %v389
    %v402 = vpack.c.b16 %v392, %v391
    %v403 = vpack.c.b16 %v394, %v393
    %v404 = vpack.c.b16 %v396, %v395
    %v429 = vunpack.c.l.b16 %v349
    %v430 = vunpack.c.l.b16 %v350
    %v431 = vunpack.c.l.b16 %v351
    %v432 = vunpack.c.l.b16 %v352
    %v433 = vunpack.c.l.b16 %v353
    %v434 = vunpack.c.l.b16 %v354
    %v435 = vunpack.c.l.b16 %v355
    %v436 = vunpack.c.l.b16 %v356
    %v437 = vunpack.c.l.b16 %v357
    %v438 = vunpack.c.l.b16 %v358
    %v439 = vunpack.c.l.b16 %v359
    %v440 = vunpack.c.l.b16 %v360
    %v441 = vunpack.c.l.b16 %v361
    %v442 = vunpack.c.l.b16 %v362
    %v443 = vunpack.c.l.b16 %v363
    %v444 = vunpack.c.l.b16 %v364
    %v445 = vpack.c.b16 %v430, %v429
    %v446 = vpack.c.b16 %v432, %v431
    %v447 = vpack.c.b16 %v434, %v433
    %v448 = vpack.c.b16 %v436, %v435
    %v449 = vpack.c.b16 %v438, %v437
    %v450 = vpack.c.b16 %v440, %v439
    %v451 = vpack.c.b16 %v442, %v441
    %v452 = vpack.c.b16 %v444, %v443
    %461 = vmatprep.subr.bf16.mxu0 0
    %462 = vmatpush1.bf16.msra.mxu0 %v445
    %463 = vmatprep.subr.bf16.mxu0 0
    %464 = vmatpush1.bf16.msra.mxu0 %v446
    %465 = vmatprep.subr.bf16.mxu0 0
    %466 = vmatpush1.bf16.msra.mxu0 %v447
    %467 = vmatprep.subr.bf16.mxu0 0
    %468 = vmatpush1.bf16.msra.mxu0 %v448
    %469 = vmatprep.subr.bf16.mxu0 0
    %470 = vmatpush1.bf16.msra.mxu0 %v449
    %471 = vmatprep.subr.bf16.mxu0 0
    %472 = vmatpush1.bf16.msra.mxu0 %v450
    %473 = vmatprep.subr.bf16.mxu0 0
    %474 = vmatpush1.bf16.msra.mxu0 %v451
    %475 = vmatprep.subr.bf16.mxu0 0
    %476 = vmatpush1.bf16.msra.mxu0 %v452
    %477 = vmatprep.subr.bf16.mxu0 0
    %478 = vmatpush1.bf16.msra.mxu0 0
    %479 = vmatprep.subr.bf16.mxu0 0
    %480 = vmatpush1.bf16.msra.mxu0 0
    %481 = vmatprep.subr.bf16.mxu0 0
    %482 = vmatpush1.bf16.msra.mxu0 0
    %483 = vmatprep.subr.bf16.mxu0 0
    %484 = vmatpush1.bf16.msra.mxu0 0
    %485 = vmatprep.subr.bf16.mxu0 0
    %486 = vmatpush1.bf16.msra.mxu0 0
    %487 = vmatprep.subr.bf16.mxu0 0
    %488 = vmatpush1.bf16.msra.mxu0 0
    %489 = vmatprep.subr.bf16.mxu0 0
    %490 = vmatpush1.bf16.msra.mxu0 0
    %491 = vmatprep.subr.bf16.mxu0 0
    %492 = vmatpush1.bf16.msra.mxu0 0
    %493 = vmatprep.mubr.bf16.mxu0 0
    %494 = vmatmul.mubr.bf16.gmra.mrb[0].mxu0 %v397
    %v495 = vpop.f32.mrb[0].mxu0
    %v496 = vadd.f32 0.0, %v495
    %v497 = vpop.f32.mrb[0].mxu0
    %v498 = vpop.f32.mrb[0].mxu0
    %v499 = vadd.f32 0.0, %v498
    %v500 = vpop.f32.mrb[0].mxu0
    %501 = vmatprep.mubr.bf16.mxu0 0
    %502 = vmatmul.mubr.bf16.gmra.mrb[0].mxu0 %v398
    %v503 = vpop.f32.mrb[0].mxu0
    %v504 = vadd.f32 0.0, %v503
    %v505 = vpop.f32.mrb[0].mxu0
    %v506 = vpop.f32.mrb[0].mxu0
    %v507 = vadd.f32 0.0, %v506
    %v508 = vpop.f32.mrb[0].mxu0
    %509 = vmatprep.mubr.bf16.mxu0 0
    %510 = vmatmul.mubr.bf16.gmra.mrb[0].mxu0 %v399
    %v511 = vpop.f32.mrb[0].mxu0
    %v512 = vadd.f32 0.0, %v511
    %v513 = vpop.f32.mrb[0].mxu0
    %v514 = vpop.f32.mrb[0].mxu0
    %v515 = vadd.f32 0.0, %v514
    %v516 = vpop.f32.mrb[0].mxu0
    %517 = vmatprep.mubr.bf16.mxu0 0
    %518 = vmatmul.mubr.bf16.gmra.mrb[0].mxu0 %v400
    %v519 = vpop.f32.mrb[0].mxu0
    %v520 = vadd.f32 0.0, %v519
    %v521 = vpop.f32.mrb[0].mxu0
    %v522 = vpop.f32.mrb[0].mxu0
    %v523 = vadd.f32 0.0, %v522
    %v524 = vpop.f32.mrb[0].mxu0
    %525 = vmatprep.mubr.bf16.mxu0 0
    %526 = vmatmul.mubr.bf16.gmra.mrb[0].mxu0 %v401
    %v527 = vpop.f32.mrb[0].mxu0
    %v528 = vadd.f32 0.0, %v527
    %v529 = vpop.f32.mrb[0].mxu0
    %v530 = vpop.f32.mrb[0].mxu0
    %v531 = vadd.f32 0.0, %v530
    %v532 = vpop.f32.mrb[0].mxu0
    %533 = vmatprep.mubr.bf16.mxu0 0
    %534 = vmatmul.mubr.bf16.gmra.mrb[0].mxu0 %v402
    %v535 = vpop.f32.mrb[0].mxu0
    %v536 = vadd.f32 0.0, %v535
    %v537 = vpop.f32.mrb[0].mxu0
    %v538 = vpop.f32.mrb[0].mxu0
    %v539 = vadd.f32 0.0, %v538
    %v540 = vpop.f32.mrb[0].mxu0
    %541 = vmatprep.mubr.bf16.mxu0 0
    %542 = vmatmul.mubr.bf16.gmra.mrb[0].mxu0 %v403
    %v543 = vpop.f32.mrb[0].mxu0
    %v544 = vadd.f32 0.0, %v543
    %v545 = vpop.f32.mrb[0].mxu0
    %v546 = vpop.f32.mrb[0].mxu0
    %v547 = vadd.f32 0.0, %v546
    %v548 = vpop.f32.mrb[0].mxu0
    %549 = vmatprep.mubr.bf16.mxu0 0
    %550 = vmatmul.mubr.bf16.gmra.mrb[0].mxu0 %v404
    %v551 = vpop.f32.mrb[0].mxu0
    %v552 = vadd.f32 0.0, %v551
    %v553 = vpop.f32.mrb[0].mxu0
    %v554 = vpop.f32.mrb[0].mxu0
    %v555 = vadd.f32 0.0, %v554
    %v556 = vpop.f32.mrb[0].mxu0
    %557 = vdwg.mxu0
    %v558 = vadd.f32 %v317, %v496
    %v559 = vadd.f32 %v318, %v499
    %v560 = vadd.f32 %v319, %v504
    %v561 = vadd.f32 %v320, %v507
    %v562 = vadd.f32 %v321, %v512
    %v563 = vadd.f32 %v322, %v515
    %v564 = vadd.f32 %v323, %v520
    %v565 = vadd.f32 %v324, %v523
    %v566 = vadd.f32 %v325, %v528
    %v567 = vadd.f32 %v326, %v531
    %v568 = vadd.f32 %v327, %v536
    %v569 = vadd.f32 %v328, %v539
    %v570 = vadd.f32 %v329, %v544
    %v571 = vadd.f32 %v330, %v547
    %v572 = vadd.f32 %v331, %v552
    %v573 = vadd.f32 %v332, %v555
    %v574 = vld [vmem:[%s4] sm:$0x1]
    %v576 = vlaneseq
    %v577 = vshrl.u32 %v576, 7
    %v578 = vsub.s32 0, %v577
    %v579 = vrot.slane %v574, %v578
    %v581 = vadd.f32 %v558, %v579
    %v582 = vadd.f32 %v559, %v579
    %v583 = vadd.f32 %v560, %v579
    %v584 = vadd.f32 %v561, %v579
    %v585 = vadd.f32 %v562, %v579
    %v586 = vadd.f32 %v563, %v579
    %v587 = vadd.f32 %v564, %v579
    %v588 = vadd.f32 %v565, %v579
    %v589 = vadd.f32 %v566, %v579
    %v590 = vadd.f32 %v567, %v579
    %v591 = vadd.f32 %v568, %v579
    %v592 = vadd.f32 %v569, %v579
    %v593 = vadd.f32 %v570, %v579
    %v594 = vadd.f32 %v571, %v579
    %v595 = vadd.f32 %v572, %v579
    %v596 = vadd.f32 %v573, %v579
    %597 = vst [vmem:[%s5] sm:$0xff] %v581
    %598 = vst [vmem:[%s5 + $0x8] sm:$0xff] %v582
    %599 = vst [vmem:[%s5 + $0x10] sm:$0xff] %v583
    %600 = vst [vmem:[%s5 + $0x18] sm:$0xff] %v584
    %601 = vst [vmem:[%s5 + $0x20] sm:$0xff] %v585
    %602 = vst [vmem:[%s5 + $0x28] sm:$0xff] %v586
    %603 = vst [vmem:[%s5 + $0x30] sm:$0xff] %v587
    %604 = vst [vmem:[%s5 + $0x38] sm:$0xff] %v588
    %605 = vst [vmem:[%s5 + $0x40] sm:$0xff] %v589
    %606 = vst [vmem:[%s5 + $0x48] sm:$0xff] %v590
    %607 = vst [vmem:[%s5 + $0x50] sm:$0xff] %v591
    %608 = vst [vmem:[%s5 + $0x58] sm:$0xff] %v592
    %609 = vst [vmem:[%s5 + $0x60] sm:$0xff] %v593
    %610 = vst [vmem:[%s5 + $0x68] sm:$0xff] %v594
    %611 = vst [vmem:[%s5 + $0x70] sm:$0xff] %v595
    %612 = vst [vmem:[%s5 + $0x78] sm:$0xff] %v596
  $region29: #{gnn_encoder_forward.7} parent=0 // pred_fallthru
    _
  // Predicated region
  $region30: #{gnn_encoder_forward.7} parent=0 // pred_check
    _
  $region31: #{gnn_encoder_forward.7} parent=0 // pred_check_branch
    %614 = sbr.rel (0) target = $region33
  $region32: #{gnn_encoder_forward.7} parent=0 // pred_region
    _
  $region33: #{gnn_encoder_forward.7} parent=0 // pred_fallthru
    _
  // Predicated region
  $region34: #{gnn_encoder_forward.7} parent=0 // pred_check
    _
  $region35: #{gnn_encoder_forward.7} parent=0 // pred_check_branch
    %616 = sbr.rel (0) target = $region37
  $region36: #{gnn_encoder_forward.7} parent=0 // pred_region
    _
  $region37: #{gnn_encoder_forward.7} parent=0 // pred_fallthru
    _

// kernel: gnn_encoder_forward.5
$region0: #{gnn_encoder_forward.5}
  #allocation0 [shape = 'u32[]', space=smem, size = 0x4, offset = 0x4, fixed_abs, tag = 'smem constant byte address 0x4 - core index']
  #allocation1 [shape = 'u32[144,128]{1,0:T(1,128)}', space=vmem, size = 0x12000, scoped, tag = 'internal scratch']
  #allocation2 [shape = 'f32[128,128]{1,0:T(8,128)}', space=vmem, size = 0x10000, scoped, tag = 'scratch operand']
  %s0 = inlined_call_operand.vmem [shape: bf16[128,128], index: 0, kind: input, shape index: {}]
  %s1 = inlined_call_operand.vmem [shape: bf16[128,128], index: 1, kind: input, shape index: {}]
  %s2 = inlined_call_operand.vmem [shape: bf16[128,128], index: 2, kind: input, shape index: {}]
  %s3 = inlined_call_operand.vmem [shape: bf16[128,128], index: 3, kind: input, shape index: {}]
  %s4 = inlined_call_operand.hbm [shape: f32[1,128], index: 4, kind: input, shape index: {}]
  %s5 = inlined_call_operand.vmem [shape: bf16[128,128], index: 5, kind: output, shape index: {}]
  %s6 = sld [smem:[#allocation0]]
  $region42: #{gnn_encoder_forward.5} parent=0
    _
  %s8 = ssub.s32 1, %s6
  %s9 = scalar_select 0, %s8, %s6
  $region1: #{gnn_encoder_forward.5} parent=0
    #allocation3 [shape = 'u8[512]{0}', space=vmem, size = 0x400, scoped, tag = 'input window, operand 4, single buffered']
    #allocation4 [shape = 's32[1]{0}', space=sflag, size = 0x4, scoped, tag = 'scoped memory for gnn_encoder_forward.5']
    %10 = vsyncpa [#allocation4], 0
    // Predicated region
    $region2: #{gnn_encoder_forward.5} parent=1 // pred_check
      _
    $region3: #{gnn_encoder_forward.5} parent=1 // pred_check_branch
      %12 = sbr.rel (0) target = $region5
    $region4: #{gnn_encoder_forward.5} parent=1 // pred_region
      _
    $region5: #{gnn_encoder_forward.5} parent=1 // pred_fallthru
      _
    // Predicated region
    $region6: #{gnn_encoder_forward.5} parent=1 // pred_check
      _
    $region7: #{gnn_encoder_forward.5} parent=1 // pred_check_branch
      %14 = sbr.rel (0) target = $region9
    $region8: #{gnn_encoder_forward.5} parent=1 // pred_region
      _
    $region9: #{gnn_encoder_forward.5} parent=1 // pred_fallthru
      _
    // Predicated region
    $region10: #{gnn_encoder_forward.5} parent=1 // pred_check
      _
    $region11: #{gnn_encoder_forward.5} parent=1 // pred_check_branch
      %16 = sbr.rel (0) target = $region13
    $region12: #{gnn_encoder_forward.5} parent=1 // pred_region
      _
    $region13: #{gnn_encoder_forward.5} parent=1 // pred_fallthru
      _
    // Predicated region
    $region14: #{gnn_encoder_forward.5} parent=1 // pred_check
      _
    $region15: #{gnn_encoder_forward.5} parent=1 // pred_check_branch
      %18 = sbr.rel (0) target = $region17
    $region16: #{gnn_encoder_forward.5} parent=1 // pred_region
      _
    $region17: #{gnn_encoder_forward.5} parent=1 // pred_fallthru
      _
    // Predicated region
    $region18: #{gnn_encoder_forward.5} parent=1 // pred_check
      _
    $region19: #{gnn_encoder_forward.5} parent=1 // pred_check_branch
      %20 = sbr.rel (0) target = $region21
    $region20: #{gnn_encoder_forward.5} parent=1 // pred_region
      %s22 = ssub.s32 16, 16
      %23 = vsyncadd [#allocation4], %s22
      %s25 = sshll.u32 [#allocation3], 4
      %s26 = int_to_ptr.vmem [resolvable:$true] %s25
      %28 = dma.hbm_to_vmem [thread:$0]  %s4, 16, %s26, [#allocation4]
    $region21: #{gnn_encoder_forward.5} parent=1 // pred_fallthru
      _
    // Predicated region
    $region22: #{gnn_encoder_forward.5} parent=1 // pred_check
      _
    $region23: #{gnn_encoder_forward.5} parent=1 // pred_check_branch
      %30 = sbr.rel (0) target = $region25
    $region24: #{gnn_encoder_forward.5} parent=1 // pred_region
      %31 = dma.done [#allocation4], 16
    $region25: #{gnn_encoder_forward.5} parent=1 // pred_fallthru
      _
    %p33 = scmp.eq.s32.totalorder 0, 0
    // Predicated region
    $region26: #{gnn_encoder_forward.5} parent=1 // pred_check
      %p34 = pneg %p33
    $region27: #{gnn_encoder_forward.5} parent=1 // pred_check_branch
      %36 = sbr.rel (%p34) target = $region29
    $region28: #{gnn_encoder_forward.5} parent=1 // pred_region
      %37 = vst [vmem:[#allocation2] sm:$0xff] 0.0
      %38 = vst [vmem:[#allocation2 + $0x8] sm:$0xff] 0.0
      %39 = vst [vmem:[#allocation2 + $0x10] sm:$0xff] 0.0
      %40 = vst [vmem:[#allocation2 + $0x18] sm:$0xff] 0.0
      %41 = vst [vmem:[#allocation2 + $0x20] sm:$0xff] 0.0
      %42 = vst [vmem:[#allocation2 + $0x28] sm:$0xff] 0.0
      %43 = vst [vmem:[#allocation2 + $0x30] sm:$0xff] 0.0
      %44 = vst [vmem:[#allocation2 + $0x38] sm:$0xff] 0.0
      %45 = vst [vmem:[#allocation2 + $0x40] sm:$0xff] 0.0
      %46 = vst [vmem:[#allocation2 + $0x48] sm:$0xff] 0.0
      %47 = vst [vmem:[#allocation2 + $0x50] sm:$0xff] 0.0
      %48 = vst [vmem:[#allocation2 + $0x58] sm:$0xff] 0.0
      %49 = vst [vmem:[#allocation2 + $0x60] sm:$0xff] 0.0
      %50 = vst [vmem:[#allocation2 + $0x68] sm:$0xff] 0.0
      %51 = vst [vmem:[#allocation2 + $0x70] sm:$0xff] 0.0
      %52 = vst [vmem:[#allocation2 + $0x78] sm:$0xff] 0.0
    $region29: #{gnn_encoder_forward.5} parent=1 // pred_fallthru
      _
    %v53 = vld [vmem:[#allocation2] sm:$0xff]
    %v54 = vld [vmem:[#allocation2 + $0x8] sm:$0xff]
    %v55 = vld [vmem:[#allocation2 + $0x10] sm:$0xff]
    %v56 = vld [vmem:[#allocation2 + $0x18] sm:$0xff]
    %v57 = vld [vmem:[#allocation2 + $0x20] sm:$0xff]
    %v58 = vld [vmem:[#allocation2 + $0x28] sm:$0xff]
    %v59 = vld [vmem:[#allocation2 + $0x30] sm:$0xff]
    %v60 = vld [vmem:[#allocation2 + $0x38] sm:$0xff]
    %v61 = vld [vmem:[#allocation2 + $0x40] sm:$0xff]
    %v62 = vld [vmem:[#allocation2 + $0x48] sm:$0xff]
    %v63 = vld [vmem:[#allocation2 + $0x50] sm:$0xff]
    %v64 = vld [vmem:[#allocation2 + $0x58] sm:$0xff]
    %v65 = vld [vmem:[#allocation2 + $0x60] sm:$0xff]
    %v66 = vld [vmem:[#allocation2 + $0x68] sm:$0xff]
    %v67 = vld [vmem:[#allocation2 + $0x70] sm:$0xff]
    %v68 = vld [vmem:[#allocation2 + $0x78] sm:$0xff]
    %v69 = vld [vmem:[%s0] sm:$0xf]
    %v70 = vld [vmem:[%s0 + $0x4] sm:$0xf]
    %v71 = vld [vmem:[%s0 + $0x8] sm:$0xf]
    %v72 = vld [vmem:[%s0 + $0xc] sm:$0xf]
    %v73 = vld [vmem:[%s0 + $0x10] sm:$0xf]
    %v74 = vld [vmem:[%s0 + $0x14] sm:$0xf]
    %v75 = vld [vmem:[%s0 + $0x18] sm:$0xf]
    %v76 = vld [vmem:[%s0 + $0x1c] sm:$0xf]
    %v77 = vld [vmem:[%s0 + $0x20] sm:$0xf]
    %v78 = vld [vmem:[%s0 + $0x24] sm:$0xf]
    %v79 = vld [vmem:[%s0 + $0x28] sm:$0xf]
    %v80 = vld [vmem:[%s0 + $0x2c] sm:$0xf]
    %v81 = vld [vmem:[%s0 + $0x30] sm:$0xf]
    %v82 = vld [vmem:[%s0 + $0x34] sm:$0xf]
    %v83 = vld [vmem:[%s0 + $0x38] sm:$0xf]
    %v84 = vld [vmem:[%s0 + $0x3c] sm:$0xf]
    %v85 = vld [vmem:[%s1] sm:$0xf]
    %v86 = vld [vmem:[%s1 + $0x4] sm:$0xf]
    %v87 = vld [vmem:[%s1 + $0x8] sm:$0xf]
    %v88 = vld [vmem:[%s1 + $0xc] sm:$0xf]
    %v89 = vld [vmem:[%s1 + $0x10] sm:$0xf]
    %v90 = vld [vmem:[%s1 + $0x14] sm:$0xf]
    %v91 = vld [vmem:[%s1 + $0x18] sm:$0xf]
    %v92 = vld [vmem:[%s1 + $0x1c] sm:$0xf]
    %v93 = vld [vmem:[%s1 + $0x20] sm:$0xf]
    %v94 = vld [vmem:[%s1 + $0x24] sm:$0xf]
    %v95 = vld [vmem:[%s1 + $0x28] sm:$0xf]
    %v96 = vld [vmem:[%s1 + $0x2c] sm:$0xf]
    %v97 = vld [vmem:[%s1 + $0x30] sm:$0xf]
    %v98 = vld [vmem:[%s1 + $0x34] sm:$0xf]
    %v99 = vld [vmem:[%s1 + $0x38] sm:$0xf]
    %v100 = vld [vmem:[%s1 + $0x3c] sm:$0xf]
    %v117 = vunpack.c.l.b16 %v69
    %v118 = vunpack.c.l.b16 %v70
    %v119 = vunpack.c.l.b16 %v71
    %v120 = vunpack.c.l.b16 %v72
    %v121 = vunpack.c.l.b16 %v73
    %v122 = vunpack.c.l.b16 %v74
    %v123 = vunpack.c.l.b16 %v75
    %v124 = vunpack.c.l.b16 %v76
    %v125 = vunpack.c.l.b16 %v77
    %v126 = vunpack.c.l.b16 %v78
    %v127 = vunpack.c.l.b16 %v79
    %v128 = vunpack.c.l.b16 %v80
    %v129 = vunpack.c.l.b16 %v81
    %v130 = vunpack.c.l.b16 %v82
    %v131 = vunpack.c.l.b16 %v83
    %v132 = vunpack.c.l.b16 %v84
    %v133 = vpack.c.b16 %v118, %v117
    %v134 = vpack.c.b16 %v120, %v119
    %v135 = vpack.c.b16 %v122, %v121
    %v136 = vpack.c.b16 %v124, %v123
    %v137 = vpack.c.b16 %v126, %v125
    %v138 = vpack.c.b16 %v128, %v127
    %v139 = vpack.c.b16 %v130, %v129
    %v140 = vpack.c.b16 %v132, %v131
    %v165 = vunpack.c.l.b16 %v85
    %v166 = vunpack.c.l.b16 %v86
    %v167 = vunpack.c.l.b16 %v87
    %v168 = vunpack.c.l.b16 %v88
    %v169 = vunpack.c.l.b16 %v89
    %v170 = vunpack.c.l.b16 %v90
    %v171 = vunpack.c.l.b16 %v91
    %v172 = vunpack.c.l.b16 %v92
    %v173 = vunpack.c.l.b16 %v93
    %v174 = vunpack.c.l.b16 %v94
    %v175 = vunpack.c.l.b16 %v95
    %v176 = vunpack.c.l.b16 %v96
    %v177 = vunpack.c.l.b16 %v97
    %v178 = vunpack.c.l.b16 %v98
    %v179 = vunpack.c.l.b16 %v99
    %v180 = vunpack.c.l.b16 %v100
    %v181 = vpack.c.b16 %v166, %v165
    %v182 = vpack.c.b16 %v168, %v167
    %v183 = vpack.c.b16 %v170, %v169
    %v184 = vpack.c.b16 %v172, %v171
    %v185 = vpack.c.b16 %v174, %v173
    %v186 = vpack.c.b16 %v176, %v175
    %v187 = vpack.c.b16 %v178, %v177
    %v188 = vpack.c.b16 %v180, %v179
    %197 = vmatprep.subr.bf16.mxu0 0
    %198 = vmatpush1.bf16.msra.mxu0 %v181
    %199 = vmatprep.subr.bf16.mxu0 0
    %200 = vmatpush1.bf16.msra.mxu0 %v182
    %201 = vmatprep.subr.bf16.mxu0 0
    %202 = vmatpush1.bf16.msra.mxu0 %v183
    %203 = vmatprep.subr.bf16.mxu0 0
    %204 = vmatpush1.bf16.msra.mxu0 %v184
    %205 = vmatprep.subr.bf16.mxu0 0
    %206 = vmatpush1.bf16.msra.mxu0 %v185
    %207 = vmatprep.subr.bf16.mxu0 0
    %208 = vmatpush1.bf16.msra.mxu0 %v186
    %209 = vmatprep.subr.bf16.mxu0 0
    %210 = vmatpush1.bf16.msra.mxu0 %v187
    %211 = vmatprep.subr.bf16.mxu0 0
    %212 = vmatpush1.bf16.msra.mxu0 %v188
    %213 = vmatprep.subr.bf16.mxu0 0
    %214 = vmatpush1.bf16.msra.mxu0 0
    %215 = vmatprep.subr.bf16.mxu0 0
    %216 = vmatpush1.bf16.msra.mxu0 0
    %217 = vmatprep.subr.bf16.mxu0 0
    %218 = vmatpush1.bf16.msra.mxu0 0
    %219 = vmatprep.subr.bf16.mxu0 0
    %220 = vmatpush1.bf16.msra.mxu0 0
    %221 = vmatprep.subr.bf16.mxu0 0
    %222 = vmatpush1.bf16.msra.mxu0 0
    %223 = vmatprep.subr.bf16.mxu0 0
    %224 = vmatpush1.bf16.msra.mxu0 0
    %225 = vmatprep.subr.bf16.mxu0 0
    %226 = vmatpush1.bf16.msra.mxu0 0
    %227 = vmatprep.subr.bf16.mxu0 0
    %228 = vmatpush1.bf16.msra.mxu0 0
    %229 = vmatprep.mubr.bf16.mxu0 0
    %230 = vmatmul.mubr.bf16.gmra.mrb[0].mxu0 %v133
    %v231 = vpop.f32.mrb[0].mxu0
    %v232 = vadd.f32 0.0, %v231
    %v233 = vpop.f32.mrb[0].mxu0
    %v234 = vpop.f32.mrb[0].mxu0
    %v235 = vadd.f32 0.0, %v234
    %v236 = vpop.f32.mrb[0].mxu0
    %237 = vmatprep.mubr.bf16.mxu0 0
    %238 = vmatmul.mubr.bf16.gmra.mrb[0].mxu0 %v134
    %v239 = vpop.f32.mrb[0].mxu0
    %v240 = vadd.f32 0.0, %v239
    %v241 = vpop.f32.mrb[0].mxu0
    %v242 = vpop.f32.mrb[0].mxu0
    %v243 = vadd.f32 0.0, %v242
    %v244 = vpop.f32.mrb[0].mxu0
    %245 = vmatprep.mubr.bf16.mxu0 0
    %246 = vmatmul.mubr.bf16.gmra.mrb[0].mxu0 %v135
    %v247 = vpop.f32.mrb[0].mxu0
    %v248 = vadd.f32 0.0, %v247
    %v249 = vpop.f32.mrb[0].mxu0
    %v250 = vpop.f32.mrb[0].mxu0
    %v251 = vadd.f32 0.0, %v250
    %v252 = vpop.f32.mrb[0].mxu0
    %253 = vmatprep.mubr.bf16.mxu0 0
    %254 = vmatmul.mubr.bf16.gmra.mrb[0].mxu0 %v136
    %v255 = vpop.f32.mrb[0].mxu0
    %v256 = vadd.f32 0.0, %v255
    %v257 = vpop.f32.mrb[0].mxu0
    %v258 = vpop.f32.mrb[0].mxu0
    %v259 = vadd.f32 0.0, %v258
    %v260 = vpop.f32.mrb[0].mxu0
    %261 = vmatprep.mubr.bf16.mxu0 0
    %262 = vmatmul.mubr.bf16.gmra.mrb[0].mxu0 %v137
    %v263 = vpop.f32.mrb[0].mxu0
    %v264 = vadd.f32 0.0, %v263
    %v265 = vpop.f32.mrb[0].mxu0
    %v266 = vpop.f32.mrb[0].mxu0
    %v267 = vadd.f32 0.0, %v266
    %v268 = vpop.f32.mrb[0].mxu0
    %269 = vmatprep.mubr.bf16.mxu0 0
    %270 = vmatmul.mubr.bf16.gmra.mrb[0].mxu0 %v138
    %v271 = vpop.f32.mrb[0].mxu0
    %v272 = vadd.f32 0.0, %v271
    %v273 = vpop.f32.mrb[0].mxu0
    %v274 = vpop.f32.mrb[0].mxu0
    %v275 = vadd.f32 0.0, %v274
    %v276 = vpop.f32.mrb[0].mxu0
    %277 = vmatprep.mubr.bf16.mxu0 0
    %278 = vmatmul.mubr.bf16.gmra.mrb[0].mxu0 %v139
    %v279 = vpop.f32.mrb[0].mxu0
    %v280 = vadd.f32 0.0, %v279
    %v281 = vpop.f32.mrb[0].mxu0
    %v282 = vpop.f32.mrb[0].mxu0
    %v283 = vadd.f32 0.0, %v282
    %v284 = vpop.f32.mrb[0].mxu0
    %285 = vmatprep.mubr.bf16.mxu0 0
    %286 = vmatmul.mubr.bf16.gmra.mrb[0].mxu0 %v140
    %v287 = vpop.f32.mrb[0].mxu0
    %v288 = vadd.f32 0.0, %v287
    %v289 = vpop.f32.mrb[0].mxu0
    %v290 = vpop.f32.mrb[0].mxu0
    %v291 = vadd.f32 0.0, %v290
    %v292 = vpop.f32.mrb[0].mxu0
    %293 = vdwg.mxu0
    %v294 = vadd.f32 %v53, %v232
    %v295 = vadd.f32 %v54, %v235
    %v296 = vadd.f32 %v55, %v240
    %v297 = vadd.f32 %v56, %v243
    %v298 = vadd.f32 %v57, %v248
    %v299 = vadd.f32 %v58, %v251
    %v300 = vadd.f32 %v59, %v256
    %v301 = vadd.f32 %v60, %v259
    %v302 = vadd.f32 %v61, %v264
    %v303 = vadd.f32 %v62, %v267
    %v304 = vadd.f32 %v63, %v272
    %v305 = vadd.f32 %v64, %v275
    %v306 = vadd.f32 %v65, %v280
    %v307 = vadd.f32 %v66, %v283
    %v308 = vadd.f32 %v67, %v288
    %v309 = vadd.f32 %v68, %v291
    %310 = vst [vmem:[#allocation2] sm:$0xff] %v294
    %311 = vst [vmem:[#allocation2 + $0x8] sm:$0xff] %v295
    %312 = vst [vmem:[#allocation2 + $0x10] sm:$0xff] %v296
    %313 = vst [vmem:[#allocation2 + $0x18] sm:$0xff] %v297
    %314 = vst [vmem:[#allocation2 + $0x20] sm:$0xff] %v298
    %315 = vst [vmem:[#allocation2 + $0x28] sm:$0xff] %v299
    %316 = vst [vmem:[#allocation2 + $0x30] sm:$0xff] %v300
    %317 = vst [vmem:[#allocation2 + $0x38] sm:$0xff] %v301
    %318 = vst [vmem:[#allocation2 + $0x40] sm:$0xff] %v302
    %319 = vst [vmem:[#allocation2 + $0x48] sm:$0xff] %v303
    %320 = vst [vmem:[#allocation2 + $0x50] sm:$0xff] %v304
    %321 = vst [vmem:[#allocation2 + $0x58] sm:$0xff] %v305
    %322 = vst [vmem:[#allocation2 + $0x60] sm:$0xff] %v306
    %323 = vst [vmem:[#allocation2 + $0x68] sm:$0xff] %v307
    %324 = vst [vmem:[#allocation2 + $0x70] sm:$0xff] %v308
    %325 = vst [vmem:[#allocation2 + $0x78] sm:$0xff] %v309
    // Predicated region
    $region30: #{gnn_encoder_forward.5} parent=1 // pred_check
      %p326 = pneg %p33
    $region31: #{gnn_encoder_forward.5} parent=1 // pred_check_branch
      %328 = sbr.rel (%p326) target = $region33
    $region32: #{gnn_encoder_forward.5} parent=1 // pred_region
      %v329 = vld [vmem:[#allocation2] sm:$0xff]
      %v330 = vld [vmem:[#allocation2 + $0x8] sm:$0xff]
      %v331 = vld [vmem:[#allocation2 + $0x10] sm:$0xff]
      %v332 = vld [vmem:[#allocation2 + $0x18] sm:$0xff]
      %v333 = vld [vmem:[#allocation2 + $0x20] sm:$0xff]
      %v334 = vld [vmem:[#allocation2 + $0x28] sm:$0xff]
      %v335 = vld [vmem:[#allocation2 + $0x30] sm:$0xff]
      %v336 = vld [vmem:[#allocation2 + $0x38] sm:$0xff]
      %v337 = vld [vmem:[#allocation2 + $0x40] sm:$0xff]
      %v338 = vld [vmem:[#allocation2 + $0x48] sm:$0xff]
      %v339 = vld [vmem:[#allocation2 + $0x50] sm:$0xff]
      %v340 = vld [vmem:[#allocation2 + $0x58] sm:$0xff]
      %v341 = vld [vmem:[#allocation2 + $0x60] sm:$0xff]
      %v342 = vld [vmem:[#allocation2 + $0x68] sm:$0xff]
      %v343 = vld [vmem:[#allocation2 + $0x70] sm:$0xff]
      %v344 = vld [vmem:[#allocation2 + $0x78] sm:$0xff]
      %v345 = vld [vmem:[%s2] sm:$0xf]
      %v346 = vld [vmem:[%s2 + $0x4] sm:$0xf]
      %v347 = vld [vmem:[%s2 + $0x8] sm:$0xf]
      %v348 = vld [vmem:[%s2 + $0xc] sm:$0xf]
      %v349 = vld [vmem:[%s2 + $0x10] sm:$0xf]
      %v350 = vld [vmem:[%s2 + $0x14] sm:$0xf]
      %v351 = vld [vmem:[%s2 + $0x18] sm:$0xf]
      %v352 = vld [vmem:[%s2 + $0x1c] sm:$0xf]
      %v353 = vld [vmem:[%s2 + $0x20] sm:$0xf]
      %v354 = vld [vmem:[%s2 + $0x24] sm:$0xf]
      %v355 = vld [vmem:[%s2 + $0x28] sm:$0xf]
      %v356 = vld [vmem:[%s2 + $0x2c] sm:$0xf]
      %v357 = vld [vmem:[%s2 + $0x30] sm:$0xf]
      %v358 = vld [vmem:[%s2 + $0x34] sm:$0xf]
      %v359 = vld [vmem:[%s2 + $0x38] sm:$0xf]
      %v360 = vld [vmem:[%s2 + $0x3c] sm:$0xf]
      %v361 = vld [vmem:[%s3] sm:$0xf]
      %v362 = vld [vmem:[%s3 + $0x4] sm:$0xf]
      %v363 = vld [vmem:[%s3 + $0x8] sm:$0xf]
      %v364 = vld [vmem:[%s3 + $0xc] sm:$0xf]
      %v365 = vld [vmem:[%s3 + $0x10] sm:$0xf]
      %v366 = vld [vmem:[%s3 + $0x14] sm:$0xf]
      %v367 = vld [vmem:[%s3 + $0x18] sm:$0xf]
      %v368 = vld [vmem:[%s3 + $0x1c] sm:$0xf]
      %v369 = vld [vmem:[%s3 + $0x20] sm:$0xf]
      %v370 = vld [vmem:[%s3 + $0x24] sm:$0xf]
      %v371 = vld [vmem:[%s3 + $0x28] sm:$0xf]
      %v372 = vld [vmem:[%s3 + $0x2c] sm:$0xf]
      %v373 = vld [vmem:[%s3 + $0x30] sm:$0xf]
      %v374 = vld [vmem:[%s3 + $0x34] sm:$0xf]
      %v375 = vld [vmem:[%s3 + $0x38] sm:$0xf]
      %v376 = vld [vmem:[%s3 + $0x3c] sm:$0xf]
      %v393 = vunpack.c.l.b16 %v345
      %v394 = vunpack.c.l.b16 %v346
      %v395 = vunpack.c.l.b16 %v347
      %v396 = vunpack.c.l.b16 %v348
      %v397 = vunpack.c.l.b16 %v349
      %v398 = vunpack.c.l.b16 %v350
      %v399 = vunpack.c.l.b16 %v351
      %v400 = vunpack.c.l.b16 %v352
      %v401 = vunpack.c.l.b16 %v353
      %v402 = vunpack.c.l.b16 %v354
      %v403 = vunpack.c.l.b16 %v355
      %v404 = vunpack.c.l.b16 %v356
      %v405 = vunpack.c.l.b16 %v357
      %v406 = vunpack.c.l.b16 %v358
      %v407 = vunpack.c.l.b16 %v359
      %v408 = vunpack.c.l.b16 %v360
      %v409 = vpack.c.b16 %v394, %v393
      %v410 = vpack.c.b16 %v396, %v395
      %v411 = vpack.c.b16 %v398, %v397
      %v412 = vpack.c.b16 %v400, %v399
      %v413 = vpack.c.b16 %v402, %v401
      %v414 = vpack.c.b16 %v404, %v403
      %v415 = vpack.c.b16 %v406, %v405
      %v416 = vpack.c.b16 %v408, %v407
      %v441 = vunpack.c.l.b16 %v361
      %v442 = vunpack.c.l.b16 %v362
      %v443 = vunpack.c.l.b16 %v363
      %v444 = vunpack.c.l.b16 %v364
      %v445 = vunpack.c.l.b16 %v365
      %v446 = vunpack.c.l.b16 %v366
      %v447 = vunpack.c.l.b16 %v367
      %v448 = vunpack.c.l.b16 %v368
      %v449 = vunpack.c.l.b16 %v369
      %v450 = vunpack.c.l.b16 %v370
      %v451 = vunpack.c.l.b16 %v371
      %v452 = vunpack.c.l.b16 %v372
      %v453 = vunpack.c.l.b16 %v373
      %v454 = vunpack.c.l.b16 %v374
      %v455 = vunpack.c.l.b16 %v375
      %v456 = vunpack.c.l.b16 %v376
      %v457 = vpack.c.b16 %v442, %v441
      %v458 = vpack.c.b16 %v444, %v443
      %v459 = vpack.c.b16 %v446, %v445
      %v460 = vpack.c.b16 %v448, %v447
      %v461 = vpack.c.b16 %v450, %v449
      %v462 = vpack.c.b16 %v452, %v451
      %v463 = vpack.c.b16 %v454, %v453
      %v464 = vpack.c.b16 %v456, %v455
      %473 = vmatprep.subr.bf16.mxu0 0
      %474 = vmatpush1.bf16.msra.mxu0 %v457
      %475 = vmatprep.subr.bf16.mxu0 0
      %476 = vmatpush1.bf16.msra.mxu0 %v458
      %477 = vmatprep.subr.bf16.mxu0 0
      %478 = vmatpush1.bf16.msra.mxu0 %v459
      %479 = vmatprep.subr.bf16.mxu0 0
      %480 = vmatpush1.bf16.msra.mxu0 %v460
      %481 = vmatprep.subr.bf16.mxu0 0
      %482 = vmatpush1.bf16.msra.mxu0 %v461
      %483 = vmatprep.subr.bf16.mxu0 0
      %484 = vmatpush1.bf16.msra.mxu0 %v462
      %485 = vmatprep.subr.bf16.mxu0 0
      %486 = vmatpush1.bf16.msra.mxu0 %v463
      %487 = vmatprep.subr.bf16.mxu0 0
      %488 = vmatpush1.bf16.msra.mxu0 %v464
      %489 = vmatprep.subr.bf16.mxu0 0
      %490 = vmatpush1.bf16.msra.mxu0 0
      %491 = vmatprep.subr.bf16.mxu0 0
      %492 = vmatpush1.bf16.msra.mxu0 0
      %493 = vmatprep.subr.bf16.mxu0 0
      %494 = vmatpush1.bf16.msra.mxu0 0
      %495 = vmatprep.subr.bf16.mxu0 0
      %496 = vmatpush1.bf16.msra.mxu0 0
      %497 = vmatprep.subr.bf16.mxu0 0
      %498 = vmatpush1.bf16.msra.mxu0 0
      %499 = vmatprep.subr.bf16.mxu0 0
      %500 = vmatpush1.bf16.msra.mxu0 0
      %501 = vmatprep.subr.bf16.mxu0 0
      %502 = vmatpush1.bf16.msra.mxu0 0
      %503 = vmatprep.subr.bf16.mxu0 0
      %504 = vmatpush1.bf16.msra.mxu0 0
      %505 = vmatprep.mubr.bf16.mxu0 0
      %506 = vmatmul.mubr.bf16.gmra.mrb[0].mxu0 %v409
      %v507 = vpop.f32.mrb[0].mxu0
      %v508 = vadd.f32 0.0, %v507
      %v509 = vpop.f32.mrb[0].mxu0
      %v510 = vpop.f32.mrb[0].mxu0
      %v511 = vadd.f32 0.0, %v510
      %v512 = vpop.f32.mrb[0].mxu0
      %513 = vmatprep.mubr.bf16.mxu0 0
      %514 = vmatmul.mubr.bf16.gmra.mrb[0].mxu0 %v410
      %v515 = vpop.f32.mrb[0].mxu0
      %v516 = vadd.f32 0.0, %v515
      %v517 = vpop.f32.mrb[0].mxu0
      %v518 = vpop.f32.mrb[0].mxu0
      %v519 = vadd.f32 0.0, %v518
      %v520 = vpop.f32.mrb[0].mxu0
      %521 = vmatprep.mubr.bf16.mxu0 0
      %522 = vmatmul.mubr.bf16.gmra.mrb[0].mxu0 %v411
      %v523 = vpop.f32.mrb[0].mxu0
      %v524 = vadd.f32 0.0, %v523
      %v525 = vpop.f32.mrb[0].mxu0
      %v526 = vpop.f32.mrb[0].mxu0
      %v527 = vadd.f32 0.0, %v526
      %v528 = vpop.f32.mrb[0].mxu0
      %529 = vmatprep.mubr.bf16.mxu0 0
      %530 = vmatmul.mubr.bf16.gmra.mrb[0].mxu0 %v412
      %v531 = vpop.f32.mrb[0].mxu0
      %v532 = vadd.f32 0.0, %v531
      %v533 = vpop.f32.mrb[0].mxu0
      %v534 = vpop.f32.mrb[0].mxu0
      %v535 = vadd.f32 0.0, %v534
      %v536 = vpop.f32.mrb[0].mxu0
      %537 = vmatprep.mubr.bf16.mxu0 0
      %538 = vmatmul.mubr.bf16.gmra.mrb[0].mxu0 %v413
      %v539 = vpop.f32.mrb[0].mxu0
      %v540 = vadd.f32 0.0, %v539
      %v541 = vpop.f32.mrb[0].mxu0
      %v542 = vpop.f32.mrb[0].mxu0
      %v543 = vadd.f32 0.0, %v542
      %v544 = vpop.f32.mrb[0].mxu0
      %545 = vmatprep.mubr.bf16.mxu0 0
      %546 = vmatmul.mubr.bf16.gmra.mrb[0].mxu0 %v414
      %v547 = vpop.f32.mrb[0].mxu0
      %v548 = vadd.f32 0.0, %v547
      %v549 = vpop.f32.mrb[0].mxu0
      %v550 = vpop.f32.mrb[0].mxu0
      %v551 = vadd.f32 0.0, %v550
      %v552 = vpop.f32.mrb[0].mxu0
      %553 = vmatprep.mubr.bf16.mxu0 0
      %554 = vmatmul.mubr.bf16.gmra.mrb[0].mxu0 %v415
      %v555 = vpop.f32.mrb[0].mxu0
      %v556 = vadd.f32 0.0, %v555
      %v557 = vpop.f32.mrb[0].mxu0
      %v558 = vpop.f32.mrb[0].mxu0
      %v559 = vadd.f32 0.0, %v558
      %v560 = vpop.f32.mrb[0].mxu0
      %561 = vmatprep.mubr.bf16.mxu0 0
      %562 = vmatmul.mubr.bf16.gmra.mrb[0].mxu0 %v416
      %v563 = vpop.f32.mrb[0].mxu0
      %v564 = vadd.f32 0.0, %v563
      %v565 = vpop.f32.mrb[0].mxu0
      %v566 = vpop.f32.mrb[0].mxu0
      %v567 = vadd.f32 0.0, %v566
      %v568 = vpop.f32.mrb[0].mxu0
      %569 = vdwg.mxu0
      %v570 = vadd.f32 %v329, %v508
      %v571 = vadd.f32 %v330, %v511
      %v572 = vadd.f32 %v331, %v516
      %v573 = vadd.f32 %v332, %v519
      %v574 = vadd.f32 %v333, %v524
      %v575 = vadd.f32 %v334, %v527
      %v576 = vadd.f32 %v335, %v532
      %v577 = vadd.f32 %v336, %v535
      %v578 = vadd.f32 %v337, %v540
      %v579 = vadd.f32 %v338, %v543
      %v580 = vadd.f32 %v339, %v548
      %v581 = vadd.f32 %v340, %v551
      %v582 = vadd.f32 %v341, %v556
      %v583 = vadd.f32 %v342, %v559
      %v584 = vadd.f32 %v343, %v564
      %v585 = vadd.f32 %v344, %v567
      %v586 = vld [vmem:[#allocation3] sm:$0x1]
      %v588 = vlaneseq
      %v589 = vshrl.u32 %v588, 7
      %v590 = vsub.s32 0, %v589
      %v591 = vrot.slane %v586, %v590
      %v593 = vadd.f32 %v570, %v591
      %v594 = vadd.f32 %v571, %v591
      %v595 = vadd.f32 %v572, %v591
      %v596 = vadd.f32 %v573, %v591
      %v597 = vadd.f32 %v574, %v591
      %v598 = vadd.f32 %v575, %v591
      %v599 = vadd.f32 %v576, %v591
      %v600 = vadd.f32 %v577, %v591
      %v601 = vadd.f32 %v578, %v591
      %v602 = vadd.f32 %v579, %v591
      %v603 = vadd.f32 %v580, %v591
      %v604 = vadd.f32 %v581, %v591
      %v605 = vadd.f32 %v582, %v591
      %v606 = vadd.f32 %v583, %v591
      %v607 = vadd.f32 %v584, %v591
      %v608 = vadd.f32 %v585, %v591
      %v609 = vmax.f32 %v593, 0.0
      %v610 = vmax.f32 %v594, 0.0
      %v611 = vmax.f32 %v595, 0.0
      %v612 = vmax.f32 %v596, 0.0
      %v613 = vmax.f32 %v597, 0.0
      %v614 = vmax.f32 %v598, 0.0
      %v615 = vmax.f32 %v599, 0.0
      %v616 = vmax.f32 %v600, 0.0
      %v617 = vmax.f32 %v601, 0.0
      %v618 = vmax.f32 %v602, 0.0
      %v619 = vmax.f32 %v603, 0.0
      %v620 = vmax.f32 %v604, 0.0
      %v621 = vmax.f32 %v605, 0.0
      %v622 = vmax.f32 %v606, 0.0
      %v623 = vmax.f32 %v607, 0.0
      %v624 = vmax.f32 %v608, 0.0
      %v625 = vpack.c.bf16 %v610, %v609
      %v626 = vpack.c.bf16 %v612, %v611
      %v627 = vpack.c.bf16 %v614, %v613
      %v628 = vpack.c.bf16 %v616, %v615
      %v629 = vpack.c.bf16 %v618, %v617
      %v630 = vpack.c.bf16 %v620, %v619
      %v631 = vpack.c.bf16 %v622, %v621
      %v632 = vpack.c.bf16 %v624, %v623
      %v641 = vunpack.c.l.b16 %v625
      %v642 = vunpack.c.h.b16 %v625
      %v643 = vunpack.c.l.b16 %v626
      %v644 = vunpack.c.h.b16 %v626
      %v645 = vunpack.c.l.b16 %v627
      %v646 = vunpack.c.h.b16 %v627
      %v647 = vunpack.c.l.b16 %v628
      %v648 = vunpack.c.h.b16 %v628
      %v649 = vunpack.c.l.b16 %v629
      %v650 = vunpack.c.h.b16 %v629
      %v651 = vunpack.c.l.b16 %v630
      %v652 = vunpack.c.h.b16 %v630
      %v653 = vunpack.c.l.b16 %v631
      %v654 = vunpack.c.h.b16 %v631
      %v655 = vunpack.c.l.b16 %v632
      %v656 = vunpack.c.h.b16 %v632
      %v657 = vpack.c.b16 %v641, %v641
      %v658 = vpack.c.b16 %v642, %v642
      %v659 = vpack.c.b16 %v643, %v643
      %v660 = vpack.c.b16 %v644, %v644
      %v661 = vpack.c.b16 %v645, %v645
      %v662 = vpack.c.b16 %v646, %v646
      %v663 = vpack.c.b16 %v647, %v647
      %v664 = vpack.c.b16 %v648, %v648
      %v665 = vpack.c.b16 %v649, %v649
      %v666 = vpack.c.b16 %v650, %v650
      %v667 = vpack.c.b16 %v651, %v651
      %v668 = vpack.c.b16 %v652, %v652
      %v669 = vpack.c.b16 %v653, %v653
      %v670 = vpack.c.b16 %v654, %v654
      %v671 = vpack.c.b16 %v655, %v655
      %v672 = vpack.c.b16 %v656, %v656
      %689 = vst [vmem:[%s5] sm:$0xf] %v657
      %690 = vst [vmem:[%s5 + $0x4] sm:$0xf] %v658
      %691 = vst [vmem:[%s5 + $0x8] sm:$0xf] %v659
      %692 = vst [vmem:[%s5 + $0xc] sm:$0xf] %v660
      %693 = vst [vmem:[%s5 + $0x10] sm:$0xf] %v661
      %694 = vst [vmem:[%s5 + $0x14] sm:$0xf] %v662
      %695 = vst [vmem:[%s5 + $0x18] sm:$0xf] %v663
      %696 = vst [vmem:[%s5 + $0x1c] sm:$0xf] %v664
      %697 = vst [vmem:[%s5 + $0x20] sm:$0xf] %v665
      %698 = vst [vmem:[%s5 + $0x24] sm:$0xf] %v666
      %699 = vst [vmem:[%s5 + $0x28] sm:$0xf] %v667
      %700 = vst [vmem:[%s5 + $0x2c] sm:$0xf] %v668
      %701 = vst [vmem:[%s5 + $0x30] sm:$0xf] %v669
      %702 = vst [vmem:[%s5 + $0x34] sm:$0xf] %v670
      %703 = vst [vmem:[%s5 + $0x38] sm:$0xf] %v671
      %704 = vst [vmem:[%s5 + $0x3c] sm:$0xf] %v672
    $region33: #{gnn_encoder_forward.5} parent=1 // pred_fallthru
      _
    // Predicated region
    $region34: #{gnn_encoder_forward.5} parent=1 // pred_check
      _
    $region35: #{gnn_encoder_forward.5} parent=1 // pred_check_branch
      %706 = sbr.rel (0) target = $region37
    $region36: #{gnn_encoder_forward.5} parent=1 // pred_region
      _
    $region37: #{gnn_encoder_forward.5} parent=1 // pred_fallthru
      _
    // Predicated region
    $region38: #{gnn_encoder_forward.5} parent=1 // pred_check
      _
    $region39: #{gnn_encoder_forward.5} parent=1 // pred_check_branch
      %708 = sbr.rel (0) target = $region41
    $region40: #{gnn_encoder_forward.5} parent=1 // pred_region
      _
    $region41: #{gnn_encoder_forward.5} parent=1 // pred_fallthru
      _
    %709 = vsyncpa [#allocation4], 1

</llo_original>
